<compile_context>
chip_gen: v7x
topology: tpu7x:2x2x1
jax: 0.10.0
libtpu: 0.0.40
codegen_flags: <defaults>
</compile_context>

<pallas_src>
import functools

import jax
import jax.numpy as jnp
from jax.experimental import pallas as pl
from jax.experimental.pallas import tpu as pltpu


# --------------------------------------------------------------------------
# Elementwise helpers (used both in-kernel and in the pure-JAX reference)
# --------------------------------------------------------------------------
def _leaky(v):
    return jnp.where(v >= 0, v, 0.01 * v)


def _sigmoid(v):
    return 1.0 / (1.0 + jnp.exp(-v))


# --------------------------------------------------------------------------
# Whole-stack mega-kernel: grid = (n_layers,), x/y resident in VMEM scratch
# --------------------------------------------------------------------------
def _layer_stack_kernel(x0_ref, y0_ref, a_ref, at_ref,
                        wxe_ref, bxe_ref, wye_ref, bye_ref,
                        wy_ref, wx_ref, bx_ref, wg_ref, bg_ref,
                        x_out_ref, y_out_ref,
                        x_sc, y_sc, *, mu, feat):
    l = pl.program_id(0)

    # ---- layer-0 prologue: fused input embeddings -> VMEM residents ----
    @pl.when(l == 0)
    def _():
        xe = jnp.dot(x0_ref[...], wxe_ref[...],
                     preferred_element_type=jnp.float32) + bxe_ref[...]
        x_sc[...] = _leaky(xe)
        ye = jnp.dot(y0_ref[...], wye_ref[...],
                     preferred_element_type=jnp.float32) + bye_ref[...]
        y_sc[...] = _leaky(ye)

    x = x_sc[...]                      # old x (both updates use it)
    a = a_ref[...]

    # ---- y_update_with_mu: y = exp(mu * (leaky((A @ x) @ Wy) - 1)) ----
    ax = jnp.dot(a, x, preferred_element_type=jnp.float32)           # (n_y, feat)
    h = _leaky(jnp.dot(ax, wy_ref[...], preferred_element_type=jnp.float32))
    y_new = jnp.exp(mu * (h - 1.0))
    y_sc[...] = y_new

    # ---- x_update (fused: mlp_x + A^T@y + 3 gates as one wide matmul) ----
    xh = _leaky(jnp.dot(x, wx_ref[...],
                        preferred_element_type=jnp.float32) + bx_ref[...])
    aty = jnp.dot(at_ref[...], y_new, preferred_element_type=jnp.float32)  # (n_x, feat)
    gates = _sigmoid(jnp.dot(aty, wg_ref[...],
                             preferred_element_type=jnp.float32) + bg_ref[...])
    y1 = gates[:, 0:feat]
    y2 = gates[:, feat:2 * feat]
    g = gates[:, 2 * feat:3 * feat]
    x_sc[...] = xh * (1.0 + y1 + y2) + g

    # ---- final layer epilogue: flush residents to the outputs ----
    @pl.when(l == pl.num_programs(0) - 1)
    def _():
        x_out_ref[...] = x_sc[...].astype(x_out_ref.dtype)
        y_out_ref[...] = y_sc[...].astype(y_out_ref.dtype)


def _block_bytes(shape, itemsize=4):
    """Bytes of a VMEM block with the last two dims padded to (8, 128)."""
    dims = list(shape)
    if len(dims) == 1:
        dims = [1] + dims
    dims[-1] = -(-dims[-1] // 128) * 128
    dims[-2] = -(-dims[-2] // 8) * 8
    n = 1
    for d in dims:
        n *= d
    return n * itemsize


def framework_fixed_mu_forward(params, A, x, y, *, mu):
    n_x, x_size = x.shape
    n_y, y_size = y.shape
    feat = params["x_emb_w"].shape[1]
    n_layers = params["wy"].shape[0]
    assert A.shape == (n_y, n_x) and n_layers >= 1

    AT = jnp.transpose(A)   # one tiny XLA transpose per forward; DMA'd once

    # ---- VMEM budget (double-buffered inputs + outputs + residents) ----
    const_shapes = [(n_x, x_size), (n_y, y_size), (n_y, n_x), (n_x, n_y),
                    (x_size, feat), (1, feat), (y_size, feat), (1, feat)]
    layer_shapes = [(feat, feat), (feat, feat), (1, feat),
                    (feat, 3 * feat), (1, 3 * feat)]
    io_shapes = [(n_x, feat), (n_y, feat)]
    est = (sum(2 * _block_bytes(s) for s in const_shapes)
           + sum(2 * _block_bytes(s) for s in layer_shapes)
           + sum(2 * _block_bytes(s) for s in io_shapes)
           + sum(_block_bytes(s) for s in io_shapes))
    if est > 48 * 1024 * 1024:
        # TODO(synk): tile the node / feature dims for problems this large.
        raise ValueError(f"working set ~{est >> 20} MiB exceeds the whole-stack "
                         "kernel's VMEM budget; tile the node/feat dims.")
    vmem_limit = int(min(64 * 1024 * 1024, max(32 * 1024 * 1024, 2 * est)))

    kernel = functools.partial(_layer_stack_kernel, mu=float(mu), feat=int(feat))

    def _const(shape):
        return pl.BlockSpec(shape, lambda l: (0, 0))

    def _per_layer(*tail):
        return pl.BlockSpec((None,) + tail, lambda l: (l, 0, 0))

    x_feat, y_feat = pl.pallas_call(
        kernel,
        out_shape=(jax.ShapeDtypeStruct((n_x, feat), jnp.float32),
                   jax.ShapeDtypeStruct((n_y, feat), jnp.float32)),
        grid_spec=pltpu.PrefetchScalarGridSpec(
            num_scalar_prefetch=0,
            grid=(n_layers,),
            in_specs=[
                _const((n_x, x_size)),        # x (raw)
                _const((n_y, y_size)),        # y (raw)
                _const((n_y, n_x)),           # A
                _const((n_x, n_y)),           # A^T
                _const((x_size, feat)),       # x_emb W
                _const((1, feat)),            # x_emb b
                _const((y_size, feat)),       # y_emb W
                _const((1, feat)),            # y_emb b
                _per_layer(feat, feat),       # Wy  (stacked over layers)
                _per_layer(feat, feat),       # Wx
                _per_layer(1, feat),          # bx
                _per_layer(feat, 3 * feat),   # [W1 | W2 | Wg]
                _per_layer(1, 3 * feat),      # [b1 | b2 | bg]
            ],
            out_specs=(
                pl.BlockSpec((n_x, feat), lambda l: (0, 0)),
                pl.BlockSpec((n_y, feat), lambda l: (0, 0)),
            ),
            scratch_shapes=[
                pltpu.VMEM((n_x, feat), jnp.float32),   # resident x
                pltpu.VMEM((n_y, feat), jnp.float32),   # resident y
            ],
        ),
        compiler_params=pltpu.CompilerParams(
            dimension_semantics=("arbitrary",),   # layers carry x/y -> sequential
            vmem_limit_bytes=vmem_limit),
    )(x, y, A, AT,
      params["x_emb_w"], params["x_emb_b"], params["y_emb_w"], params["y_emb_b"],
      params["wy"], params["wx"], params["bx"], params["wgate"], params["bgate"])

    # Tiny (feat -> 1) output heads: left to XLA (lane width 1 gains nothing
    # from a dedicated pallas_call).
    x_out = _leaky(x_feat @ params["xo_w"] + params["xo_b"])
    y_out = _leaky(y_feat @ params["yo_w"] + params["yo_b"])
    return x_out, y_out


# --------------------------------------------------------------------------
# Parameters (pre-stacked / pre-concatenated once at init) & pure-JAX reference
# --------------------------------------------------------------------------
def _init_params(key, x_size, y_size, feat, n_layers, scale=0.05):
    ks = jax.random.split(key, 13)

    def w(k, shape):
        return scale * jax.random.normal(k, shape, dtype=jnp.float32)

    return {
        "x_emb_w": w(ks[0], (x_size, feat)), "x_emb_b": w(ks[1], (1, feat)),
        "y_emb_w": w(ks[2], (y_size, feat)), "y_emb_b": w(ks[3], (1, feat)),
        "xo_w": w(ks[4], (feat, 1)), "xo_b": w(ks[5], (1, 1)),
        "yo_w": w(ks[6], (feat, 1)), "yo_b": w(ks[7], (1, 1)),
        "wy": w(ks[8], (n_layers, feat, feat)),                   # no bias (spec)
        "wx": w(ks[9], (n_layers, feat, feat)),
        "bx": w(ks[10], (n_layers, 1, feat)),
        "wgate": w(ks[11], (n_layers, feat, 3 * feat)),           # [W1 | W2 | Wg]
        "bgate": w(ks[12], (n_layers, 1, 3 * feat)),              # [b1 | b2 | bg]
    }


def _reference(params, A, x, y, mu):
    feat = params["x_emb_w"].shape[1]
    x = _leaky(x @ params["x_emb_w"] + params["x_emb_b"])
    y = _leaky(y @ params["y_emb_w"] + params["y_emb_b"])
    for l in range(params["wy"].shape[0]):
        h = _leaky((A @ x) @ params["wy"][l])
        y = jnp.exp(mu * (h - 1.0))
        xh = _leaky(x @ params["wx"][l] + params["bx"][l])
        ATy = A.T @ y
        z = ATy @ params["wgate"][l] + params["bgate"][l]
        y1 = _sigmoid(z[:, 0:feat])
        y2 = _sigmoid(z[:, feat:2 * feat])
        g = _sigmoid(z[:, 2 * feat:3 * feat])
        x = xh + (y1 + y2) * xh + g
    x_out = _leaky(x @ params["xo_w"] + params["xo_b"])
    y_out = _leaky(y @ params["yo_w"] + params["yo_b"])
    return x_out, y_out


# --------------------------------------------------------------------------
if __name__ == "__main__":
    key = jax.random.PRNGKey(0)
    k_par, k_A, k_x, k_y = jax.random.split(key, 4)

    # Small shapes consistent with the module: A is (n_y, n_x).
    n_x, n_y = 16, 8
    x_size, y_size, feat_size, n_layers = 32, 16, 128, 3
    mu = 0.75

    params = _init_params(k_par, x_size, y_size, feat_size, n_layers)
    A = 0.1 * jax.random.normal(k_A, (n_y, n_x), dtype=jnp.float32)
    x = jax.random.normal(k_x, (n_x, x_size), dtype=jnp.float32)
    y = jax.random.normal(k_y, (n_y, y_size), dtype=jnp.float32)

    fwd = jax.jit(functools.partial(framework_fixed_mu_forward, mu=mu))
    x_out, y_out = jax.block_until_ready(fwd(params, A, x, y))

    x_ref, y_ref = _reference(params, A, x, y, mu)
    assert x_out.shape == (n_x, 1) and y_out.shape == (n_y, 1)
    assert jnp.allclose(x_out, x_ref, atol=1e-3, rtol=1e-3), "x mismatch vs reference"
    assert jnp.allclose(y_out, y_ref, atol=1e-3, rtol=1e-3), "y mismatch vs reference"

    print("KERNEL_OK")
</pallas_src>

<mosaic_0001>
module attributes {stable_mosaic.version = 11 : i64} {
  func.func @_layer_stack_kernel(%arg0: i32, %arg1: memref<16x32xf32, #tpu.memory_space<vmem>>, %arg2: memref<8x16xf32, #tpu.memory_space<vmem>>, %arg3: memref<8x16xf32, #tpu.memory_space<vmem>>, %arg4: memref<16x8xf32, #tpu.memory_space<vmem>>, %arg5: memref<32x128xf32, #tpu.memory_space<vmem>>, %arg6: memref<1x128xf32, #tpu.memory_space<vmem>>, %arg7: memref<16x128xf32, #tpu.memory_space<vmem>>, %arg8: memref<1x128xf32, #tpu.memory_space<vmem>>, %arg9: memref<1x128x128xf32, #tpu.memory_space<vmem>>, %arg10: memref<1x128x128xf32, #tpu.memory_space<vmem>>, %arg11: memref<1x1x128xf32, #tpu.memory_space<vmem>>, %arg12: memref<1x128x384xf32, #tpu.memory_space<vmem>>, %arg13: memref<1x1x384xf32, #tpu.memory_space<vmem>>, %arg14: memref<16x128xf32, #tpu.memory_space<vmem>>, %arg15: memref<8x128xf32, #tpu.memory_space<vmem>>, %arg16: memref<16x128xf32, #tpu.memory_space<vmem>>, %arg17: memref<8x128xf32, #tpu.memory_space<vmem>>) attributes {dimension_semantics = [#tpu.dimension_semantics<arbitrary>], iteration_bounds = array<i64: 3>, scalar_prefetch = 0 : i64, scratch_operands = 2 : i64, tpu.core_type = #tpu.core_type<tc>, window_params = [{pipeline_mode = #tpu.pipeline_mode<synchronous>, transform_indices = @transform_0, window_bounds = array<i64: 16, 32>}, {pipeline_mode = #tpu.pipeline_mode<synchronous>, transform_indices = @transform_1, window_bounds = array<i64: 8, 16>}, {pipeline_mode = #tpu.pipeline_mode<synchronous>, transform_indices = @transform_2, window_bounds = array<i64: 8, 16>}, {pipeline_mode = #tpu.pipeline_mode<synchronous>, transform_indices = @transform_3, window_bounds = array<i64: 16, 8>}, {pipeline_mode = #tpu.pipeline_mode<synchronous>, transform_indices = @transform_4, window_bounds = array<i64: 32, 128>}, {pipeline_mode = #tpu.pipeline_mode<synchronous>, transform_indices = @transform_5, window_bounds = array<i64: 1, 128>}, {pipeline_mode = #tpu.pipeline_mode<synchronous>, transform_indices = @transform_6, window_bounds = array<i64: 16, 128>}, {pipeline_mode = #tpu.pipeline_mode<synchronous>, transform_indices = @transform_7, window_bounds = array<i64: 1, 128>}, {transform_indices = @transform_8, window_bounds = array<i64: 1, 128, 128>}, {transform_indices = @transform_9, window_bounds = array<i64: 1, 128, 128>}, {transform_indices = @transform_10, window_bounds = array<i64: 1, 1, 128>}, {transform_indices = @transform_11, window_bounds = array<i64: 1, 128, 384>}, {transform_indices = @transform_12, window_bounds = array<i64: 1, 1, 384>}, {pipeline_mode = #tpu.pipeline_mode<synchronous>, transform_indices = @transform_13, window_bounds = array<i64: 16, 128>}, {pipeline_mode = #tpu.pipeline_mode<synchronous>, transform_indices = @transform_14, window_bounds = array<i64: 8, 128>}]} {
    %c0_i32 = arith.constant 0 : i32
    %0 = arith.cmpi eq, %arg0, %c0_i32 : i32
    %1 = arith.extui %0 : i1 to i32
    %c0_i32_0 = arith.constant 0 : i32
    %2 = arith.cmpi ne, %1, %c0_i32_0 : i32
    scf.if %2 {
      %c0_40 = arith.constant 0 : index
      %c0_41 = arith.constant 0 : index
      %60 = vector.load %arg1[%c0_40, %c0_41] : memref<16x32xf32, #tpu.memory_space<vmem>>, vector<16x32xf32>
      %c0_42 = arith.constant 0 : index
      %c0_43 = arith.constant 0 : index
      %61 = vector.load %arg5[%c0_42, %c0_43] : memref<32x128xf32, #tpu.memory_space<vmem>>, vector<32x128xf32>
      %cst_44 = arith.constant dense<0.000000e+00> : vector<16x128xf32>
      %62 = tpu.matmul %60, %61, %cst_44 {dimension_numbers = #tpu.dot_dimension_numbers<[1], [0], [0], [1], [0, 0, 1, 1], [], []>} : vector<16x32xf32>, vector<32x128xf32>, vector<16x128xf32> -> vector<16x128xf32>
      %c0_45 = arith.constant 0 : index
      %c0_46 = arith.constant 0 : index
      %63 = vector.load %arg6[%c0_45, %c0_46] : memref<1x128xf32, #tpu.memory_space<vmem>>, vector<1x128xf32>
      %64 = vector.broadcast %63 : vector<1x128xf32> to vector<16x128xf32>
      %65 = arith.addf %62, %64 : vector<16x128xf32>
      %cst_47 = arith.constant 0.000000e+00 : f32
      %66 = vector.broadcast %cst_47 : f32 to vector<16x128xf32>
      %67 = arith.cmpf oge, %65, %66 : vector<16x128xf32>
      %cst_48 = arith.constant 0.00999999977 : f32
      %68 = vector.broadcast %cst_48 : f32 to vector<16x128xf32>
      %69 = arith.mulf %68, %65 : vector<16x128xf32>
      %70 = arith.select %67, %65, %69 : vector<16x128xi1>, vector<16x128xf32>
      %c0_49 = arith.constant 0 : index
      %c0_50 = arith.constant 0 : index
      %71 = vector.load %arg16[%c0_49, %c0_50] : memref<16x128xf32, #tpu.memory_space<vmem>>, vector<16x128xf32>
      tpu.vector_store %arg16[%c0_49, %c0_50], %70 {strides = array<i32>} : memref<16x128xf32, #tpu.memory_space<vmem>>, vector<16x128xf32>,
      %c0_51 = arith.constant 0 : index
      %c0_52 = arith.constant 0 : index
      %72 = vector.load %arg2[%c0_51, %c0_52] : memref<8x16xf32, #tpu.memory_space<vmem>>, vector<8x16xf32>
      %c0_53 = arith.constant 0 : index
      %c0_54 = arith.constant 0 : index
      %73 = vector.load %arg7[%c0_53, %c0_54] : memref<16x128xf32, #tpu.memory_space<vmem>>, vector<16x128xf32>
      %cst_55 = arith.constant dense<0.000000e+00> : vector<8x128xf32>
      %74 = tpu.matmul %72, %73, %cst_55 {dimension_numbers = #tpu.dot_dimension_numbers<[1], [0], [0], [1], [0, 0, 1, 1], [], []>} : vector<8x16xf32>, vector<16x128xf32>, vector<8x128xf32> -> vector<8x128xf32>
      %c0_56 = arith.constant 0 : index
      %c0_57 = arith.constant 0 : index
      %75 = vector.load %arg8[%c0_56, %c0_57] : memref<1x128xf32, #tpu.memory_space<vmem>>, vector<1x128xf32>
      %76 = vector.broadcast %75 : vector<1x128xf32> to vector<8x128xf32>
      %77 = arith.addf %74, %76 : vector<8x128xf32>
      %cst_58 = arith.constant 0.000000e+00 : f32
      %78 = vector.broadcast %cst_58 : f32 to vector<8x128xf32>
      %79 = arith.cmpf oge, %77, %78 : vector<8x128xf32>
      %cst_59 = arith.constant 0.00999999977 : f32
      %80 = vector.broadcast %cst_59 : f32 to vector<8x128xf32>
      %81 = arith.mulf %80, %77 : vector<8x128xf32>
      %82 = arith.select %79, %77, %81 : vector<8x128xi1>, vector<8x128xf32>
      %c0_60 = arith.constant 0 : index
      %c0_61 = arith.constant 0 : index
      %83 = vector.load %arg17[%c0_60, %c0_61] : memref<8x128xf32, #tpu.memory_space<vmem>>, vector<8x128xf32>
      tpu.vector_store %arg17[%c0_60, %c0_61], %82 {strides = array<i32>} : memref<8x128xf32, #tpu.memory_space<vmem>>, vector<8x128xf32>,
    } else {
    }
    %c0 = arith.constant 0 : index
    %c0_1 = arith.constant 0 : index
    %3 = vector.load %arg16[%c0, %c0_1] : memref<16x128xf32, #tpu.memory_space<vmem>>, vector<16x128xf32>
    %c0_2 = arith.constant 0 : index
    %c0_3 = arith.constant 0 : index
    %4 = vector.load %arg3[%c0_2, %c0_3] : memref<8x16xf32, #tpu.memory_space<vmem>>, vector<8x16xf32>
    %cst = arith.constant dense<0.000000e+00> : vector<8x128xf32>
    %5 = tpu.matmul %4, %3, %cst {dimension_numbers = #tpu.dot_dimension_numbers<[1], [0], [0], [1], [0, 0, 1, 1], [], []>} : vector<8x16xf32>, vector<16x128xf32>, vector<8x128xf32> -> vector<8x128xf32>
    %c0_4 = arith.constant 0 : index
    %c0_5 = arith.constant 0 : index
    %c0_6 = arith.constant 0 : index
    %6 = vector.load %arg9[%c0_4, %c0_5, %c0_6] : memref<1x128x128xf32, #tpu.memory_space<vmem>>, vector<1x128x128xf32>
    %7 = vector.shape_cast %6 : vector<1x128x128xf32> to vector<128x128xf32>
    %cst_7 = arith.constant dense<0.000000e+00> : vector<8x128xf32>
    %8 = tpu.matmul %5, %7, %cst_7 {dimension_numbers = #tpu.dot_dimension_numbers<[1], [0], [0], [1], [0, 0, 1, 1], [], []>} : vector<8x128xf32>, vector<128x128xf32>, vector<8x128xf32> -> vector<8x128xf32>
    %cst_8 = arith.constant 0.000000e+00 : f32
    %9 = vector.broadcast %cst_8 : f32 to vector<8x128xf32>
    %10 = arith.cmpf oge, %8, %9 : vector<8x128xf32>
    %cst_9 = arith.constant 0.00999999977 : f32
    %11 = vector.broadcast %cst_9 : f32 to vector<8x128xf32>
    %12 = arith.mulf %11, %8 : vector<8x128xf32>
    %13 = arith.select %10, %8, %12 : vector<8x128xi1>, vector<8x128xf32>
    %cst_10 = arith.constant 1.000000e+00 : f32
    %14 = vector.broadcast %cst_10 : f32 to vector<8x128xf32>
    %15 = arith.subf %13, %14 : vector<8x128xf32>
    %cst_11 = arith.constant 7.500000e-01 : f32
    %16 = vector.broadcast %cst_11 : f32 to vector<8x128xf32>
    %17 = arith.mulf %16, %15 : vector<8x128xf32>
    %18 = math.exp %17 : vector<8x128xf32>
    %c0_12 = arith.constant 0 : index
    %c0_13 = arith.constant 0 : index
    %19 = vector.load %arg17[%c0_12, %c0_13] : memref<8x128xf32, #tpu.memory_space<vmem>>, vector<8x128xf32>
    tpu.vector_store %arg17[%c0_12, %c0_13], %18 {strides = array<i32>} : memref<8x128xf32, #tpu.memory_space<vmem>>, vector<8x128xf32>,
    %c0_14 = arith.constant 0 : index
    %c0_15 = arith.constant 0 : index
    %c0_16 = arith.constant 0 : index
    %20 = vector.load %arg10[%c0_14, %c0_15, %c0_16] : memref<1x128x128xf32, #tpu.memory_space<vmem>>, vector<1x128x128xf32>
    %21 = vector.shape_cast %20 : vector<1x128x128xf32> to vector<128x128xf32>
    %cst_17 = arith.constant dense<0.000000e+00> : vector<16x128xf32>
    %22 = tpu.matmul %3, %21, %cst_17 {dimension_numbers = #tpu.dot_dimension_numbers<[1], [0], [0], [1], [0, 0, 1, 1], [], []>} : vector<16x128xf32>, vector<128x128xf32>, vector<16x128xf32> -> vector<16x128xf32>
    %c0_18 = arith.constant 0 : index
    %c0_19 = arith.constant 0 : index
    %c0_20 = arith.constant 0 : index
    %23 = vector.load %arg11[%c0_18, %c0_19, %c0_20] : memref<1x1x128xf32, #tpu.memory_space<vmem>>, vector<1x1x128xf32>
    %24 = vector.shape_cast %23 : vector<1x1x128xf32> to vector<1x128xf32>
    %25 = vector.broadcast %24 : vector<1x128xf32> to vector<16x128xf32>
    %26 = arith.addf %22, %25 : vector<16x128xf32>
    %cst_21 = arith.constant 0.000000e+00 : f32
    %27 = vector.broadcast %cst_21 : f32 to vector<16x128xf32>
    %28 = arith.cmpf oge, %26, %27 : vector<16x128xf32>
    %cst_22 = arith.constant 0.00999999977 : f32
    %29 = vector.broadcast %cst_22 : f32 to vector<16x128xf32>
    %30 = arith.mulf %29, %26 : vector<16x128xf32>
    %31 = arith.select %28, %26, %30 : vector<16x128xi1>, vector<16x128xf32>
    %c0_23 = arith.constant 0 : index
    %c0_24 = arith.constant 0 : index
    %32 = vector.load %arg4[%c0_23, %c0_24] : memref<16x8xf32, #tpu.memory_space<vmem>>, vector<16x8xf32>
    %cst_25 = arith.constant dense<0.000000e+00> : vector<16x128xf32>
    %33 = tpu.matmul %32, %18, %cst_25 {dimension_numbers = #tpu.dot_dimension_numbers<[1], [0], [0], [1], [0, 0, 1, 1], [], []>} : vector<16x8xf32>, vector<8x128xf32>, vector<16x128xf32> -> vector<16x128xf32>
    %c0_26 = arith.constant 0 : index
    %c0_27 = arith.constant 0 : index
    %c0_28 = arith.constant 0 : index
    %34 = vector.load %arg12[%c0_26, %c0_27, %c0_28] : memref<1x128x384xf32, #tpu.memory_space<vmem>>, vector<1x128x384xf32>
    %35 = vector.shape_cast %34 : vector<1x128x384xf32> to vector<128x384xf32>
    %cst_29 = arith.constant dense<0.000000e+00> : vector<16x384xf32>
    %36 = tpu.matmul %33, %35, %cst_29 {dimension_numbers = #tpu.dot_dimension_numbers<[1], [0], [0], [1], [0, 0, 1, 1], [], []>} : vector<16x128xf32>, vector<128x384xf32>, vector<16x384xf32> -> vector<16x384xf32>
    %c0_30 = arith.constant 0 : index
    %c0_31 = arith.constant 0 : index
    %c0_32 = arith.constant 0 : index
    %37 = vector.load %arg13[%c0_30, %c0_31, %c0_32] : memref<1x1x384xf32, #tpu.memory_space<vmem>>, vector<1x1x384xf32>
    %38 = vector.shape_cast %37 : vector<1x1x384xf32> to vector<1x384xf32>
    %39 = vector.broadcast %38 : vector<1x384xf32> to vector<16x384xf32>
    %40 = arith.addf %36, %39 : vector<16x384xf32>
    %cst_33 = arith.constant 0.000000e+00 : f32
    %41 = vector.broadcast %cst_33 : f32 to vector<16x384xf32>
    %42 = arith.subf %41, %40 : vector<16x384xf32>
    %43 = math.exp %42 : vector<16x384xf32>
    %cst_34 = arith.constant 1.000000e+00 : f32
    %44 = vector.broadcast %cst_34 : f32 to vector<16x384xf32>
    %45 = arith.addf %44, %43 : vector<16x384xf32>
    %cst_35 = arith.constant 1.000000e+00 : f32
    %46 = vector.broadcast %cst_35 : f32 to vector<16x384xf32>
    %47 = arith.divf %46, %45 : vector<16x384xf32>
    %48 = vector.extract_strided_slice %47 {offsets = [0, 0], sizes = [16, 128], strides = [1, 1]} : vector<16x384xf32> to vector<16x128xf32>
    %49 = vector.extract_strided_slice %47 {offsets = [0, 128], sizes = [16, 128], strides = [1, 1]} : vector<16x384xf32> to vector<16x128xf32>
    %50 = vector.extract_strided_slice %47 {offsets = [0, 256], sizes = [16, 128], strides = [1, 1]} : vector<16x384xf32> to vector<16x128xf32>
    %cst_36 = arith.constant 1.000000e+00 : f32
    %51 = vector.broadcast %cst_36 : f32 to vector<16x128xf32>
    %52 = arith.addf %51, %48 : vector<16x128xf32>
    %53 = arith.addf %52, %49 : vector<16x128xf32>
    %54 = arith.mulf %31, %53 : vector<16x128xf32>
    %55 = arith.addf %54, %50 : vector<16x128xf32>
    %c0_37 = arith.constant 0 : index
    %c0_38 = arith.constant 0 : index
    %56 = vector.load %arg16[%c0_37, %c0_38] : memref<16x128xf32, #tpu.memory_space<vmem>>, vector<16x128xf32>
    tpu.vector_store %arg16[%c0_37, %c0_38], %55 {strides = array<i32>} : memref<16x128xf32, #tpu.memory_space<vmem>>, vector<16x128xf32>,
    %c2_i32 = arith.constant 2 : i32
    %57 = arith.cmpi eq, %arg0, %c2_i32 : i32
    %58 = arith.extui %57 : i1 to i32
    %c0_i32_39 = arith.constant 0 : i32
    %59 = arith.cmpi ne, %58, %c0_i32_39 : i32
    scf.if %59 {
      %c0_40 = arith.constant 0 : index
      %c0_41 = arith.constant 0 : index
      %60 = vector.load %arg16[%c0_40, %c0_41] : memref<16x128xf32, #tpu.memory_space<vmem>>, vector<16x128xf32>
      %c0_42 = arith.constant 0 : index
      %c0_43 = arith.constant 0 : index
      %61 = vector.load %arg14[%c0_42, %c0_43] : memref<16x128xf32, #tpu.memory_space<vmem>>, vector<16x128xf32>
      tpu.vector_store %arg14[%c0_42, %c0_43], %60 {strides = array<i32>} : memref<16x128xf32, #tpu.memory_space<vmem>>, vector<16x128xf32>,
      %c0_44 = arith.constant 0 : index
      %c0_45 = arith.constant 0 : index
      %62 = vector.load %arg17[%c0_44, %c0_45] : memref<8x128xf32, #tpu.memory_space<vmem>>, vector<8x128xf32>
      %c0_46 = arith.constant 0 : index
      %c0_47 = arith.constant 0 : index
      %63 = vector.load %arg15[%c0_46, %c0_47] : memref<8x128xf32, #tpu.memory_space<vmem>>, vector<8x128xf32>
      tpu.vector_store %arg15[%c0_46, %c0_47], %62 {strides = array<i32>} : memref<8x128xf32, #tpu.memory_space<vmem>>, vector<8x128xf32>,
    } else {
    }
    return
  }
  func.func @transform_0(%arg0: i32) -> (i32, i32) {
    %c0_i32 = arith.constant 0 : i32
    %c0_i32_0 = arith.constant 0 : i32
    %c0_i32_1 = arith.constant 0 : i32
    return %c0_i32, %c0_i32_0 : i32, i32
  }
  func.func @transform_1(%arg0: i32) -> (i32, i32) {
    %c0_i32 = arith.constant 0 : i32
    %c0_i32_0 = arith.constant 0 : i32
    %c0_i32_1 = arith.constant 0 : i32
    return %c0_i32, %c0_i32_0 : i32, i32
  }
  func.func @transform_2(%arg0: i32) -> (i32, i32) {
    %c0_i32 = arith.constant 0 : i32
    %c0_i32_0 = arith.constant 0 : i32
    %c0_i32_1 = arith.constant 0 : i32
    return %c0_i32, %c0_i32_0 : i32, i32
  }
  func.func @transform_3(%arg0: i32) -> (i32, i32) {
    %c0_i32 = arith.constant 0 : i32
    %c0_i32_0 = arith.constant 0 : i32
    %c0_i32_1 = arith.constant 0 : i32
    return %c0_i32, %c0_i32_0 : i32, i32
  }
  func.func @transform_4(%arg0: i32) -> (i32, i32) {
    %c0_i32 = arith.constant 0 : i32
    %c0_i32_0 = arith.constant 0 : i32
    %c0_i32_1 = arith.constant 0 : i32
    return %c0_i32, %c0_i32_0 : i32, i32
  }
  func.func @transform_5(%arg0: i32) -> (i32, i32) {
    %c0_i32 = arith.constant 0 : i32
    %c0_i32_0 = arith.constant 0 : i32
    %c0_i32_1 = arith.constant 0 : i32
    return %c0_i32, %c0_i32_0 : i32, i32
  }
  func.func @transform_6(%arg0: i32) -> (i32, i32) {
    %c0_i32 = arith.constant 0 : i32
    %c0_i32_0 = arith.constant 0 : i32
    %c0_i32_1 = arith.constant 0 : i32
    return %c0_i32, %c0_i32_0 : i32, i32
  }
  func.func @transform_7(%arg0: i32) -> (i32, i32) {
    %c0_i32 = arith.constant 0 : i32
    %c0_i32_0 = arith.constant 0 : i32
    %c0_i32_1 = arith.constant 0 : i32
    return %c0_i32, %c0_i32_0 : i32, i32
  }
  func.func @transform_8(%arg0: i32) -> (i32, i32, i32) {
    %c0_i32 = arith.constant 0 : i32
    %c0_i32_0 = arith.constant 0 : i32
    %c0_i32_1 = arith.constant 0 : i32
    return %arg0, %c0_i32, %c0_i32_0 : i32, i32, i32
  }
  func.func @transform_9(%arg0: i32) -> (i32, i32, i32) {
    %c0_i32 = arith.constant 0 : i32
    %c0_i32_0 = arith.constant 0 : i32
    %c0_i32_1 = arith.constant 0 : i32
    return %arg0, %c0_i32, %c0_i32_0 : i32, i32, i32
  }
  func.func @transform_10(%arg0: i32) -> (i32, i32, i32) {
    %c0_i32 = arith.constant 0 : i32
    %c0_i32_0 = arith.constant 0 : i32
    %c0_i32_1 = arith.constant 0 : i32
    return %arg0, %c0_i32, %c0_i32_0 : i32, i32, i32
  }
  func.func @transform_11(%arg0: i32) -> (i32, i32, i32) {
    %c0_i32 = arith.constant 0 : i32
    %c0_i32_0 = arith.constant 0 : i32
    %c0_i32_1 = arith.constant 0 : i32
    return %arg0, %c0_i32, %c0_i32_0 : i32, i32, i32
  }
  func.func @transform_12(%arg0: i32) -> (i32, i32, i32) {
    %c0_i32 = arith.constant 0 : i32
    %c0_i32_0 = arith.constant 0 : i32
    %c0_i32_1 = arith.constant 0 : i32
    return %arg0, %c0_i32, %c0_i32_0 : i32, i32, i32
  }
  func.func @transform_13(%arg0: i32) -> (i32, i32) {
    %c0_i32 = arith.constant 0 : i32
    %c0_i32_0 = arith.constant 0 : i32
    %c0_i32_1 = arith.constant 0 : i32
    return %c0_i32, %c0_i32_0 : i32, i32
  }
  func.func @transform_14(%arg0: i32) -> (i32, i32) {
    %c0_i32 = arith.constant 0 : i32
    %c0_i32_0 = arith.constant 0 : i32
    %c0_i32_1 = arith.constant 0 : i32
    return %c0_i32, %c0_i32_0 : i32, i32
  }
}

</mosaic_0001>

<llo_original>
// kernel: framework_fixed_mu_forward.1
$region0: #{framework_fixed_mu_forward.1}
  #allocation0 [shape = 'u32[]', space=smem, size = 0x4, offset = 0x4, fixed_abs, tag = 'smem constant byte address 0x4 - core index']
  #allocation1 [shape = 'u32[144,128]{1,0:T(1,128)}', space=vmem, size = 0x12000, scoped, tag = 'internal scratch']
  #allocation2 [shape = 'f32[16,128]{1,0:T(8,128)}', space=vmem, size = 0x2000, scoped, tag = 'scratch operand']
  #allocation3 [shape = 'f32[8,128]{1,0:T(8,128)}', space=vmem, size = 0x1000, scoped, tag = 'scratch operand']
  %s0 = inlined_call_operand.hbm [shape: f32[16,32], index: 0, kind: input, shape index: {}]
  %s1 = inlined_call_operand.hbm [shape: f32[8,16], index: 1, kind: input, shape index: {}]
  %s2 = inlined_call_operand.vmem [shape: f32[8,16], index: 2, kind: input, shape index: {}]
  %s3 = inlined_call_operand.vmem [shape: f32[16,8], index: 3, kind: input, shape index: {}]
  %s4 = inlined_call_operand.vmem [shape: f32[32,128], index: 4, kind: input, shape index: {}]
  %s5 = inlined_call_operand.vmem [shape: f32[1,128], index: 5, kind: input, shape index: {}]
  %s6 = inlined_call_operand.hbm [shape: f32[16,128], index: 6, kind: input, shape index: {}]
  %s7 = inlined_call_operand.vmem [shape: f32[1,128], index: 7, kind: input, shape index: {}]
  %s8 = inlined_call_operand.hbm [shape: f32[3,128,128], index: 8, kind: input, shape index: {}]
  %s9 = inlined_call_operand.hbm [shape: f32[3,128,128], index: 9, kind: input, shape index: {}]
  %s10 = inlined_call_operand.vmem [shape: f32[3,1,128], index: 10, kind: input, shape index: {}]
  %s11 = inlined_call_operand.hbm [shape: f32[3,128,384], index: 11, kind: input, shape index: {}]
  %s12 = inlined_call_operand.vmem [shape: f32[3,1,384], index: 12, kind: input, shape index: {}]
  %s13 = inlined_call_operand.vmem [shape: f32[16,128], index: 13, kind: output, shape index: {0}]
  %s14 = inlined_call_operand.vmem [shape: f32[8,128], index: 14, kind: output, shape index: {1}]
  %15 = xla_tuple %s13, %s14
  %s16 = sld [smem:[#allocation0]]
  $region125: #{framework_fixed_mu_forward.1} parent=0
    _
  %s18 = ssub.s32 1, %s16
  %s19 = scalar_select 0, %s18, %s16
  $region1: #{framework_fixed_mu_forward.1} parent=0
    #allocation4 [shape = 'u8[8192]{0}', space=vmem, size = 0x2000, scoped, tag = 'input window, operand 0, single buffered']
    #allocation5 [shape = 's32[2]{0}', space=sflag, size = 0x8, scoped, tag = 'scoped memory for framework_fixed_mu_forward.1']
    #allocation6 [shape = 'u8[4096]{0}', space=vmem, size = 0x1000, scoped, tag = 'input window, operand 1, single buffered']
    #allocation7 [shape = 's32[1]{0}', space=sflag, size = 0x4, scoped, tag = 'scoped memory for framework_fixed_mu_forward.1']
    #allocation8 [shape = 'u8[8192]{0}', space=vmem, size = 0x2000, scoped, tag = 'input window, operand 6, single buffered']
    #allocation9 [shape = 'u8[131072]{0}', space=vmem, size = 0x20000, scoped, tag = 'input window, operand 8']
    #allocation10 [shape = 's32[2]{0}', space=sflag, size = 0x8, scoped, tag = 'scoped memory for framework_fixed_mu_forward.1']
    #allocation11 [shape = 'u8[131072]{0}', space=vmem, size = 0x20000, scoped, tag = 'input window, operand 9']
    #allocation12 [shape = 'u8[393216]{0}', space=vmem, size = 0x60000, scoped, tag = 'input window, operand 11']
    #allocation13 [shape = 's32[2]{0}', space=sflag, size = 0x8, scoped, tag = 'scoped memory for framework_fixed_mu_forward.1']
    %20 = vsyncpa [#allocation5], 0
    %21 = vsyncpa [#allocation7], 0
    %22 = vsyncpa [#allocation10], 0
    %s23 = scalar_lea.sflag [#allocation10], 1
    %24 = vsyncpa %s23, 0
    %25 = vsyncpa [#allocation13], 0
    %s26 = scalar_lea.sflag [#allocation13], 1
    %27 = vsyncpa %s26, 0
    loop: start=0, step=1, limit=5
    $region2: #{framework_fixed_mu_forward.1} parent=1 // loop_pre_header
      _
    $region3: #{framework_fixed_mu_forward.1} parent=1 // loop_header
      %s29 = sphi 0, %s33
      %p30 = scmp.ge.s32.totalorder %s29, 5
      %s37 = sphi 0, %s37
      %s39 = sphi 0, %s37
      %s40 = sphi 0, %s39
      %s54 = sphi 0, %s40
      %s58 = sphi 0, %s58
      %s60 = sphi 0, %s58
      %s61 = sphi 0, %s60
      %s75 = sphi 0, %s61
      %s79 = sphi 0, %s79
      %s81 = sphi 0, %s79
      %s82 = sphi 0, %s81
      %s96 = sphi 0, %s82
      %s100 = sphi 0, %s100
      %s102 = sphi 0, %s100
      %s103 = sphi 0, %s102
      %s117 = sphi 0, %s103
      %s121 = sphi 0, %s121
      %s123 = sphi 0, %s121
      %s124 = sphi 0, %s123
      %s138 = sphi 0, %s124
      %s142 = sphi 0, %s142
      %s144 = sphi 0, %s142
      %s145 = sphi 0, %s144
      %s159 = sphi 0, %s145
      %s163 = sphi 0, %s163
      %s165 = sphi 0, %s163
      %s166 = sphi 0, %s165
      %s180 = sphi 0, %s166
      %s184 = sphi 0, %s184
      %s186 = sphi 0, %s184
      %s187 = sphi 0, %s186
      %s201 = sphi 0, %s187
      %s207 = sphi 0, %s209
      %s210 = sphi 0, %s207
      %s211 = sphi 0, %s210
      %s227 = sphi 0, %s211
      %s233 = sphi 0, %s235
      %s236 = sphi 0, %s233
      %s237 = sphi 0, %s236
      %s253 = sphi 0, %s237
      %s259 = sphi 0, %s261
      %s262 = sphi 0, %s259
      %s263 = sphi 0, %s262
      %s279 = sphi 0, %s263
      %s285 = sphi 0, %s287
      %s288 = sphi 0, %s285
      %s289 = sphi 0, %s288
      %s305 = sphi 0, %s289
      %s311 = sphi 0, %s313
      %s314 = sphi 0, %s311
      %s315 = sphi 0, %s314
      %s331 = sphi 0, %s315
      %s335 = sphi 0, %s335
      %s337 = sphi 0, %s335
      %s338 = sphi 0, %s337
      %s352 = sphi 0, %s338
      %s356 = sphi 0, %s356
      %s358 = sphi 0, %s356
      %s359 = sphi 0, %s358
      %s373 = sphi 0, %s359
    $region4: #{framework_fixed_mu_forward.1} parent=1 // loop_header_branch
      %32 = sbr.rel (%p30) target = $region8
    $region5: #{framework_fixed_mu_forward.1} parent=1 // loop_body
      %s34 = ssub.s32 %s29, 1
      %s35 = ssub.s32 %s29, 2
      %s36 = sadd.s32 %s29, 1
      %s38 = sadd.s32 %s37, 1
      %p41 = scmp.eq.s32.totalorder %s29, 2
      %p42 = scmp.ne.s32.totalorder %s37, %s39
      %p43 = scmp.eq.s32.totalorder %s29, 0
      %p44 = por %p42, %p43
      %p45 = scmp.ne.s32.totalorder %s37, %s39
      %p46 = scmp.eq.s32.totalorder %s34, 2
      %p47 = por %p45, %p46
      %p48 = scmp.ne.s32.totalorder %s39, %s40
      %p49 = scmp.eq.s32.totalorder %s34, 0
      %p50 = por %p48, %p49
      %p51 = scmp.ne.s32.totalorder %s39, %s40
      %p52 = scmp.eq.s32.totalorder %s35, 2
      %p53 = por %p51, %p52
      %p55 = scmp.ne.s32.totalorder %s40, %s54
      %p56 = scmp.eq.s32.totalorder %s35, 0
      %p57 = por %p55, %p56
      %s59 = sadd.s32 %s58, 1
      %p62 = scmp.eq.s32.totalorder %s29, 2
      %p63 = scmp.ne.s32.totalorder %s58, %s60
      %p64 = scmp.eq.s32.totalorder %s29, 0
      %p65 = por %p63, %p64
      %p66 = scmp.ne.s32.totalorder %s58, %s60
      %p67 = scmp.eq.s32.totalorder %s34, 2
      %p68 = por %p66, %p67
      %p69 = scmp.ne.s32.totalorder %s60, %s61
      %p70 = scmp.eq.s32.totalorder %s34, 0
      %p71 = por %p69, %p70
      %p72 = scmp.ne.s32.totalorder %s60, %s61
      %p73 = scmp.eq.s32.totalorder %s35, 2
      %p74 = por %p72, %p73
      %p76 = scmp.ne.s32.totalorder %s61, %s75
      %p77 = scmp.eq.s32.totalorder %s35, 0
      %p78 = por %p76, %p77
      %s80 = sadd.s32 %s79, 1
      %p83 = scmp.eq.s32.totalorder %s29, 2
      %p84 = scmp.ne.s32.totalorder %s79, %s81
      %p85 = scmp.eq.s32.totalorder %s29, 0
      %p86 = por %p84, %p85
      %p87 = scmp.ne.s32.totalorder %s79, %s81
      %p88 = scmp.eq.s32.totalorder %s34, 2
      %p89 = por %p87, %p88
      %p90 = scmp.ne.s32.totalorder %s81, %s82
      %p91 = scmp.eq.s32.totalorder %s34, 0
      %p92 = por %p90, %p91
      %p93 = scmp.ne.s32.totalorder %s81, %s82
      %p94 = scmp.eq.s32.totalorder %s35, 2
      %p95 = por %p93, %p94
      %p97 = scmp.ne.s32.totalorder %s82, %s96
      %p98 = scmp.eq.s32.totalorder %s35, 0
      %p99 = por %p97, %p98
      %s101 = sadd.s32 %s100, 1
      %p104 = scmp.eq.s32.totalorder %s29, 2
      %p105 = scmp.ne.s32.totalorder %s100, %s102
      %p106 = scmp.eq.s32.totalorder %s29, 0
      %p107 = por %p105, %p106
      %p108 = scmp.ne.s32.totalorder %s100, %s102
      %p109 = scmp.eq.s32.totalorder %s34, 2
      %p110 = por %p108, %p109
      %p111 = scmp.ne.s32.totalorder %s102, %s103
      %p112 = scmp.eq.s32.totalorder %s34, 0
      %p113 = por %p111, %p112
      %p114 = scmp.ne.s32.totalorder %s102, %s103
      %p115 = scmp.eq.s32.totalorder %s35, 2
      %p116 = por %p114, %p115
      %p118 = scmp.ne.s32.totalorder %s103, %s117
      %p119 = scmp.eq.s32.totalorder %s35, 0
      %p120 = por %p118, %p119
      %s122 = sadd.s32 %s121, 1
      %p125 = scmp.eq.s32.totalorder %s29, 2
      %p126 = scmp.ne.s32.totalorder %s121, %s123
      %p127 = scmp.eq.s32.totalorder %s29, 0
      %p128 = por %p126, %p127
      %p129 = scmp.ne.s32.totalorder %s121, %s123
      %p130 = scmp.eq.s32.totalorder %s34, 2
      %p131 = por %p129, %p130
      %p132 = scmp.ne.s32.totalorder %s123, %s124
      %p133 = scmp.eq.s32.totalorder %s34, 0
      %p134 = por %p132, %p133
      %p135 = scmp.ne.s32.totalorder %s123, %s124
      %p136 = scmp.eq.s32.totalorder %s35, 2
      %p137 = por %p135, %p136
      %p139 = scmp.ne.s32.totalorder %s124, %s138
      %p140 = scmp.eq.s32.totalorder %s35, 0
      %p141 = por %p139, %p140
      %s143 = sadd.s32 %s142, 1
      %p146 = scmp.eq.s32.totalorder %s29, 2
      %p147 = scmp.ne.s32.totalorder %s142, %s144
      %p148 = scmp.eq.s32.totalorder %s29, 0
      %p149 = por %p147, %p148
      %p150 = scmp.ne.s32.totalorder %s142, %s144
      %p151 = scmp.eq.s32.totalorder %s34, 2
      %p152 = por %p150, %p151
      %p153 = scmp.ne.s32.totalorder %s144, %s145
      %p154 = scmp.eq.s32.totalorder %s34, 0
      %p155 = por %p153, %p154
      %p156 = scmp.ne.s32.totalorder %s144, %s145
      %p157 = scmp.eq.s32.totalorder %s35, 2
      %p158 = por %p156, %p157
      %p160 = scmp.ne.s32.totalorder %s145, %s159
      %p161 = scmp.eq.s32.totalorder %s35, 0
      %p162 = por %p160, %p161
      %s164 = sadd.s32 %s163, 1
      %p167 = scmp.eq.s32.totalorder %s29, 2
      %p168 = scmp.ne.s32.totalorder %s163, %s165
      %p169 = scmp.eq.s32.totalorder %s29, 0
      %p170 = por %p168, %p169
      %p171 = scmp.ne.s32.totalorder %s163, %s165
      %p172 = scmp.eq.s32.totalorder %s34, 2
      %p173 = por %p171, %p172
      %p174 = scmp.ne.s32.totalorder %s165, %s166
      %p175 = scmp.eq.s32.totalorder %s34, 0
      %p176 = por %p174, %p175
      %p177 = scmp.ne.s32.totalorder %s165, %s166
      %p178 = scmp.eq.s32.totalorder %s35, 2
      %p179 = por %p177, %p178
      %p181 = scmp.ne.s32.totalorder %s166, %s180
      %p182 = scmp.eq.s32.totalorder %s35, 0
      %p183 = por %p181, %p182
      %s185 = sadd.s32 %s184, 1
      %p188 = scmp.eq.s32.totalorder %s29, 2
      %p189 = scmp.ne.s32.totalorder %s184, %s186
      %p190 = scmp.eq.s32.totalorder %s29, 0
      %p191 = por %p189, %p190
      %p192 = scmp.ne.s32.totalorder %s184, %s186
      %p193 = scmp.eq.s32.totalorder %s34, 2
      %p194 = por %p192, %p193
      %p195 = scmp.ne.s32.totalorder %s186, %s187
      %p196 = scmp.eq.s32.totalorder %s34, 0
      %p197 = por %p195, %p196
      %p198 = scmp.ne.s32.totalorder %s186, %s187
      %p199 = scmp.eq.s32.totalorder %s35, 2
      %p200 = por %p198, %p199
      %p202 = scmp.ne.s32.totalorder %s187, %s201
      %p203 = scmp.eq.s32.totalorder %s35, 0
      %p204 = por %p202, %p203
      %s205 = ssub.s32 %s29, %s36
      %p206 = scmp.eq.s32.totalorder %s205, 0
      %s208 = sadd.s32 %s207, 1
      %s209 = scalar_select %p206, %s207, %s208
      %p212 = pneg %p206
      %p213 = scmp.eq.s32.totalorder %s29, 2
      %p214 = por %p212, %p213
      %p215 = scmp.ne.s32.totalorder %s207, %s210
      %p216 = scmp.eq.s32.totalorder %s29, 0
      %p217 = por %p215, %p216
      %p218 = scmp.ne.s32.totalorder %s207, %s210
      %p219 = scmp.eq.s32.totalorder %s34, 2
      %p220 = por %p218, %p219
      %p221 = scmp.ne.s32.totalorder %s210, %s211
      %p222 = scmp.eq.s32.totalorder %s34, 0
      %p223 = por %p221, %p222
      %p224 = scmp.ne.s32.totalorder %s210, %s211
      %p225 = scmp.eq.s32.totalorder %s35, 2
      %p226 = por %p224, %p225
      %p228 = scmp.ne.s32.totalorder %s211, %s227
      %p229 = scmp.eq.s32.totalorder %s35, 0
      %p230 = por %p228, %p229
      %s231 = ssub.s32 %s29, %s36
      %p232 = scmp.eq.s32.totalorder %s231, 0
      %s234 = sadd.s32 %s233, 1
      %s235 = scalar_select %p232, %s233, %s234
      %p238 = pneg %p232
      %p239 = scmp.eq.s32.totalorder %s29, 2
      %p240 = por %p238, %p239
      %p241 = scmp.ne.s32.totalorder %s233, %s236
      %p242 = scmp.eq.s32.totalorder %s29, 0
      %p243 = por %p241, %p242
      %p244 = scmp.ne.s32.totalorder %s233, %s236
      %p245 = scmp.eq.s32.totalorder %s34, 2
      %p246 = por %p244, %p245
      %p247 = scmp.ne.s32.totalorder %s236, %s237
      %p248 = scmp.eq.s32.totalorder %s34, 0
      %p249 = por %p247, %p248
      %p250 = scmp.ne.s32.totalorder %s236, %s237
      %p251 = scmp.eq.s32.totalorder %s35, 2
      %p252 = por %p250, %p251
      %p254 = scmp.ne.s32.totalorder %s237, %s253
      %p255 = scmp.eq.s32.totalorder %s35, 0
      %p256 = por %p254, %p255
      %s257 = ssub.s32 %s29, %s36
      %p258 = scmp.eq.s32.totalorder %s257, 0
      %s260 = sadd.s32 %s259, 1
      %s261 = scalar_select %p258, %s259, %s260
      %p264 = pneg %p258
      %p265 = scmp.eq.s32.totalorder %s29, 2
      %p266 = por %p264, %p265
      %p267 = scmp.ne.s32.totalorder %s259, %s262
      %p268 = scmp.eq.s32.totalorder %s29, 0
      %p269 = por %p267, %p268
      %p270 = scmp.ne.s32.totalorder %s259, %s262
      %p271 = scmp.eq.s32.totalorder %s34, 2
      %p272 = por %p270, %p271
      %p273 = scmp.ne.s32.totalorder %s262, %s263
      %p274 = scmp.eq.s32.totalorder %s34, 0
      %p275 = por %p273, %p274
      %p276 = scmp.ne.s32.totalorder %s262, %s263
      %p277 = scmp.eq.s32.totalorder %s35, 2
      %p278 = por %p276, %p277
      %p280 = scmp.ne.s32.totalorder %s263, %s279
      %p281 = scmp.eq.s32.totalorder %s35, 0
      %p282 = por %p280, %p281
      %s283 = ssub.s32 %s29, %s36
      %p284 = scmp.eq.s32.totalorder %s283, 0
      %s286 = sadd.s32 %s285, 1
      %s287 = scalar_select %p284, %s285, %s286
      %p290 = pneg %p284
      %p291 = scmp.eq.s32.totalorder %s29, 2
      %p292 = por %p290, %p291
      %p293 = scmp.ne.s32.totalorder %s285, %s288
      %p294 = scmp.eq.s32.totalorder %s29, 0
      %p295 = por %p293, %p294
      %p296 = scmp.ne.s32.totalorder %s285, %s288
      %p297 = scmp.eq.s32.totalorder %s34, 2
      %p298 = por %p296, %p297
      %p299 = scmp.ne.s32.totalorder %s288, %s289
      %p300 = scmp.eq.s32.totalorder %s34, 0
      %p301 = por %p299, %p300
      %p302 = scmp.ne.s32.totalorder %s288, %s289
      %p303 = scmp.eq.s32.totalorder %s35, 2
      %p304 = por %p302, %p303
      %p306 = scmp.ne.s32.totalorder %s289, %s305
      %p307 = scmp.eq.s32.totalorder %s35, 0
      %p308 = por %p306, %p307
      %s309 = ssub.s32 %s29, %s36
      %p310 = scmp.eq.s32.totalorder %s309, 0
      %s312 = sadd.s32 %s311, 1
      %s313 = scalar_select %p310, %s311, %s312
      %p316 = pneg %p310
      %p317 = scmp.eq.s32.totalorder %s29, 2
      %p318 = por %p316, %p317
      %p319 = scmp.ne.s32.totalorder %s311, %s314
      %p320 = scmp.eq.s32.totalorder %s29, 0
      %p321 = por %p319, %p320
      %p322 = scmp.ne.s32.totalorder %s311, %s314
      %p323 = scmp.eq.s32.totalorder %s34, 2
      %p324 = por %p322, %p323
      %p325 = scmp.ne.s32.totalorder %s314, %s315
      %p326 = scmp.eq.s32.totalorder %s34, 0
      %p327 = por %p325, %p326
      %p328 = scmp.ne.s32.totalorder %s314, %s315
      %p329 = scmp.eq.s32.totalorder %s35, 2
      %p330 = por %p328, %p329
      %p332 = scmp.ne.s32.totalorder %s315, %s331
      %p333 = scmp.eq.s32.totalorder %s35, 0
      %p334 = por %p332, %p333
      %s336 = sadd.s32 %s335, 1
      %p339 = scmp.eq.s32.totalorder %s29, 2
      %p340 = scmp.ne.s32.totalorder %s335, %s337
      %p341 = scmp.eq.s32.totalorder %s29, 0
      %p342 = por %p340, %p341
      %p343 = scmp.ne.s32.totalorder %s335, %s337
      %p344 = scmp.eq.s32.totalorder %s34, 2
      %p345 = por %p343, %p344
      %p346 = scmp.ne.s32.totalorder %s337, %s338
      %p347 = scmp.eq.s32.totalorder %s34, 0
      %p348 = por %p346, %p347
      %p349 = scmp.ne.s32.totalorder %s337, %s338
      %p350 = scmp.eq.s32.totalorder %s35, 2
      %p351 = por %p349, %p350
      %p353 = scmp.ne.s32.totalorder %s338, %s352
      %p354 = scmp.eq.s32.totalorder %s35, 0
      %p355 = por %p353, %p354
      %s357 = sadd.s32 %s356, 1
      %p360 = scmp.eq.s32.totalorder %s29, 2
      %p361 = scmp.ne.s32.totalorder %s356, %s358
      %p362 = scmp.eq.s32.totalorder %s29, 0
      %p363 = por %p361, %p362
      %p364 = scmp.ne.s32.totalorder %s356, %s358
      %p365 = scmp.eq.s32.totalorder %s34, 2
      %p366 = por %p364, %p365
      %p367 = scmp.ne.s32.totalorder %s358, %s359
      %p368 = scmp.eq.s32.totalorder %s34, 0
      %p369 = por %p367, %p368
      %p370 = scmp.ne.s32.totalorder %s358, %s359
      %p371 = scmp.eq.s32.totalorder %s35, 2
      %p372 = por %p370, %p371
      %p374 = scmp.ne.s32.totalorder %s359, %s373
      %p375 = scmp.eq.s32.totalorder %s35, 0
      %p376 = por %p374, %p375
      %p377 = scmp.le.s32.totalorder 1, %s29
      %p378 = scmp.lt.s32.totalorder %s29, 4
      %p379 = pnand %p377, %p378
      %p380 = pneg %p379
      // Predicated region
      $region9: #{framework_fixed_mu_forward.1} parent=5 // pred_check
        _
      $region10: #{framework_fixed_mu_forward.1} parent=5 // pred_check_branch
        %382 = sbr.rel (%p379) target = $region12
      $region11: #{framework_fixed_mu_forward.1} parent=5 // pred_region
        %s383 = ssub.s32 %s29, 1
        // Predicated region
        $region13: #{framework_fixed_mu_forward.1} parent=11 // pred_check
          %p384 = pneg %p50
        $region14: #{framework_fixed_mu_forward.1} parent=11 // pred_check_branch
          %386 = sbr.rel (%p384) target = $region16
        $region15: #{framework_fixed_mu_forward.1} parent=11 // pred_region
          %s388 = ssub.s32 256, 256
          %389 = vsyncadd [#allocation5], %s388
          %s390 = sshll.u32 [#allocation4], 4
          %s391 = int_to_ptr.vmem [resolvable:$true] %s390
          %396 = dma.hbm_to_vmem [thread:$0]  %s0, 256, %s391, [#allocation5], 128, 128, 8
        $region16: #{framework_fixed_mu_forward.1} parent=11 // pred_fallthru
          _
        // Predicated region
        $region17: #{framework_fixed_mu_forward.1} parent=11 // pred_check
          %p397 = pneg %p71
        $region18: #{framework_fixed_mu_forward.1} parent=11 // pred_check_branch
          %399 = sbr.rel (%p397) target = $region20
        $region19: #{framework_fixed_mu_forward.1} parent=11 // pred_region
          %s401 = ssub.s32 128, 128
          %402 = vsyncadd [#allocation7], %s401
          %s404 = sshll.u32 [#allocation6], 4
          %s405 = int_to_ptr.vmem [resolvable:$true] %s404
          %407 = dma.hbm_to_vmem [thread:$0]  %s1, 128, %s405, [#allocation7]
        $region20: #{framework_fixed_mu_forward.1} parent=11 // pred_fallthru
          _
        // Predicated region
        $region21: #{framework_fixed_mu_forward.1} parent=11 // pred_check
          %p408 = pneg %p92
        $region22: #{framework_fixed_mu_forward.1} parent=11 // pred_check_branch
          %410 = sbr.rel (%p408) target = $region24
        $region23: #{framework_fixed_mu_forward.1} parent=11 // pred_region
          _
        $region24: #{framework_fixed_mu_forward.1} parent=11 // pred_fallthru
          _
        // Predicated region
        $region25: #{framework_fixed_mu_forward.1} parent=11 // pred_check
          %p411 = pneg %p113
        $region26: #{framework_fixed_mu_forward.1} parent=11 // pred_check_branch
          %413 = sbr.rel (%p411) target = $region28
        $region27: #{framework_fixed_mu_forward.1} parent=11 // pred_region
          _
        $region28: #{framework_fixed_mu_forward.1} parent=11 // pred_fallthru
          _
        // Predicated region
        $region29: #{framework_fixed_mu_forward.1} parent=11 // pred_check
          %p414 = pneg %p134
        $region30: #{framework_fixed_mu_forward.1} parent=11 // pred_check_branch
          %416 = sbr.rel (%p414) target = $region32
        $region31: #{framework_fixed_mu_forward.1} parent=11 // pred_region
          _
        $region32: #{framework_fixed_mu_forward.1} parent=11 // pred_fallthru
          _
        // Predicated region
        $region33: #{framework_fixed_mu_forward.1} parent=11 // pred_check
          %p417 = pneg %p155
        $region34: #{framework_fixed_mu_forward.1} parent=11 // pred_check_branch
          %419 = sbr.rel (%p417) target = $region36
        $region35: #{framework_fixed_mu_forward.1} parent=11 // pred_region
          _
        $region36: #{framework_fixed_mu_forward.1} parent=11 // pred_fallthru
          _
        // Predicated region
        $region37: #{framework_fixed_mu_forward.1} parent=11 // pred_check
          %p420 = pneg %p176
        $region38: #{framework_fixed_mu_forward.1} parent=11 // pred_check_branch
          %422 = sbr.rel (%p420) target = $region40
        $region39: #{framework_fixed_mu_forward.1} parent=11 // pred_region
          %s424 = ssub.s32 256, 256
          %425 = vsyncadd [#allocation7], %s424
          %s426 = sshll.u32 [#allocation8], 4
          %s427 = int_to_ptr.vmem [resolvable:$true] %s426
          %432 = dma.hbm_to_vmem [thread:$0]  %s6, 256, %s427, [#allocation7], 128, 128, 8
        $region40: #{framework_fixed_mu_forward.1} parent=11 // pred_fallthru
          _
        // Predicated region
        $region41: #{framework_fixed_mu_forward.1} parent=11 // pred_check
          %p433 = pneg %p197
        $region42: #{framework_fixed_mu_forward.1} parent=11 // pred_check_branch
          %435 = sbr.rel (%p433) target = $region44
        $region43: #{framework_fixed_mu_forward.1} parent=11 // pred_region
          _
        $region44: #{framework_fixed_mu_forward.1} parent=11 // pred_fallthru
          _
      $region12: #{framework_fixed_mu_forward.1} parent=5 // pred_fallthru
        _
      %p436 = scmp.lt.s32.totalorder %s29, 3
      // Predicated region
      $region45: #{framework_fixed_mu_forward.1} parent=5 // pred_check
        %p437 = pneg %p436
      $region46: #{framework_fixed_mu_forward.1} parent=5 // pred_check_branch
        %439 = sbr.rel (%p437) target = $region48
      $region47: #{framework_fixed_mu_forward.1} parent=5 // pred_region
        // Predicated region
        $region49: #{framework_fixed_mu_forward.1} parent=47 // pred_check
          %p440 = pneg %p217
        $region50: #{framework_fixed_mu_forward.1} parent=47 // pred_check_branch
          %442 = sbr.rel (%p440) target = $region52
        $region51: #{framework_fixed_mu_forward.1} parent=47 // pred_region
          %s443 = sand.u32 %s29, 1
          %s444 = scalar_lea.sflag [#allocation10], %s443
          %s445 = sand.u32 %s207, 1
          %s446 = smul.addr %s445, 128
          %s447 = scalar_lea.vmem [#allocation9], %s446
          %s449 = ssub.s32 2048, 2048
          %450 = vsyncadd %s444, %s449
          %s451 = smul.addr %s29, 16
          %s452 = smul.addr %s451, 128
          %s453 = scalar_lea.hbm %s8, %s452
          %s454 = sshll.u32 %s447, 4
          %s455 = int_to_ptr.vmem [resolvable:$true] %s454
          %460 = dma.hbm_to_vmem [thread:$0]  %s453, 2048, %s455, %s444, 128, 128, 8
        $region52: #{framework_fixed_mu_forward.1} parent=47 // pred_fallthru
          _
        // Predicated region
        $region53: #{framework_fixed_mu_forward.1} parent=47 // pred_check
          %p461 = pneg %p243
        $region54: #{framework_fixed_mu_forward.1} parent=47 // pred_check_branch
          %463 = sbr.rel (%p461) target = $region56
        $region55: #{framework_fixed_mu_forward.1} parent=47 // pred_region
          %s464 = sand.u32 %s29, 1
          %s465 = scalar_lea.sflag [#allocation10], %s464
          %s466 = sand.u32 %s233, 1
          %s467 = smul.addr %s466, 128
          %s468 = scalar_lea.vmem [#allocation11], %s467
          %s470 = ssub.s32 2048, 2048
          %471 = vsyncadd %s465, %s470
          %s472 = smul.addr %s29, 16
          %s473 = smul.addr %s472, 128
          %s474 = scalar_lea.hbm %s9, %s473
          %s475 = sshll.u32 %s468, 4
          %s476 = int_to_ptr.vmem [resolvable:$true] %s475
          %481 = dma.hbm_to_vmem [thread:$0]  %s474, 2048, %s476, %s465, 128, 128, 8
        $region56: #{framework_fixed_mu_forward.1} parent=47 // pred_fallthru
          _
        // Predicated region
        $region57: #{framework_fixed_mu_forward.1} parent=47 // pred_check
          %p482 = pneg %p269
        $region58: #{framework_fixed_mu_forward.1} parent=47 // pred_check_branch
          %484 = sbr.rel (%p482) target = $region60
        $region59: #{framework_fixed_mu_forward.1} parent=47 // pred_region
          %p485 = scmp.lt.s32.totalorder %s29, 2
          %s486 = scalar_select %p485, %s29, 2
          %s487 = scalar_lea.vmem %s10, %s486
        $region60: #{framework_fixed_mu_forward.1} parent=47 // pred_fallthru
          _
        // Predicated region
        $region61: #{framework_fixed_mu_forward.1} parent=47 // pred_check
          %p488 = pneg %p295
        $region62: #{framework_fixed_mu_forward.1} parent=47 // pred_check_branch
          %490 = sbr.rel (%p488) target = $region64
        $region63: #{framework_fixed_mu_forward.1} parent=47 // pred_region
          %s491 = sand.u32 %s285, 1
          %s492 = scalar_lea.sflag [#allocation13], %s491
          %s493 = sand.u32 %s285, 1
          %s494 = smul.addr %s493, 384
          %s495 = scalar_lea.vmem [#allocation12], %s494
          %s497 = ssub.s32 6144, 6144
          %498 = vsyncadd %s492, %s497
          %s499 = smul.addr %s29, 48
          %s500 = smul.addr %s499, 128
          %s501 = scalar_lea.hbm %s11, %s500
          %s502 = sshll.u32 %s495, 4
          %s503 = int_to_ptr.vmem [resolvable:$true] %s502
          %508 = dma.hbm_to_vmem [thread:$0]  %s501, 6144, %s503, %s492, 384, 384, 24
        $region64: #{framework_fixed_mu_forward.1} parent=47 // pred_fallthru
          _
        // Predicated region
        $region65: #{framework_fixed_mu_forward.1} parent=47 // pred_check
          %p509 = pneg %p321
        $region66: #{framework_fixed_mu_forward.1} parent=47 // pred_check_branch
          %511 = sbr.rel (%p509) target = $region68
        $region67: #{framework_fixed_mu_forward.1} parent=47 // pred_region
          %p512 = scmp.lt.s32.totalorder %s29, 2
          %s513 = scalar_select %p512, %s29, 2
          %s514 = smul.addr %s513, 3
          %s515 = scalar_lea.vmem %s12, %s514
        $region68: #{framework_fixed_mu_forward.1} parent=47 // pred_fallthru
          _
      $region48: #{framework_fixed_mu_forward.1} parent=5 // pred_fallthru
        _
      %p516 = scmp.le.s32.totalorder 1, %s29
      %p517 = scmp.lt.s32.totalorder %s29, 4
      %p518 = pnand %p516, %p517
      %p519 = pneg %p518
      // Predicated region
      $region69: #{framework_fixed_mu_forward.1} parent=5 // pred_check
        _
      $region70: #{framework_fixed_mu_forward.1} parent=5 // pred_check_branch
        %521 = sbr.rel (%p518) target = $region72
      $region71: #{framework_fixed_mu_forward.1} parent=5 // pred_region
        %s522 = ssub.s32 %s29, 1
        // Predicated region
        $region73: #{framework_fixed_mu_forward.1} parent=71 // pred_check
          %p523 = pneg %p50
        $region74: #{framework_fixed_mu_forward.1} parent=71 // pred_check_branch
          %525 = sbr.rel (%p523) target = $region76
        $region75: #{framework_fixed_mu_forward.1} parent=71 // pred_region
          %526 = dma.done [#allocation5], 256
        $region76: #{framework_fixed_mu_forward.1} parent=71 // pred_fallthru
          _
        // Predicated region
        $region77: #{framework_fixed_mu_forward.1} parent=71 // pred_check
          %p527 = pneg %p71
        $region78: #{framework_fixed_mu_forward.1} parent=71 // pred_check_branch
          %529 = sbr.rel (%p527) target = $region80
        $region79: #{framework_fixed_mu_forward.1} parent=71 // pred_region
          %530 = dma.done [#allocation7], 128
        $region80: #{framework_fixed_mu_forward.1} parent=71 // pred_fallthru
          _
        // Predicated region
        $region81: #{framework_fixed_mu_forward.1} parent=71 // pred_check
          %p531 = pneg %p176
        $region82: #{framework_fixed_mu_forward.1} parent=71 // pred_check_branch
          %533 = sbr.rel (%p531) target = $region84
        $region83: #{framework_fixed_mu_forward.1} parent=71 // pred_region
          %534 = dma.done [#allocation7], 256
        $region84: #{framework_fixed_mu_forward.1} parent=71 // pred_fallthru
          _
        %s535 = sand.u32 %s34, 1
        %s536 = scalar_lea.sflag [#allocation10], %s535
        %s537 = sand.u32 %s210, 1
        %s538 = smul.addr %s537, 128
        %s539 = scalar_lea.vmem [#allocation9], %s538
        // Predicated region
        $region85: #{framework_fixed_mu_forward.1} parent=71 // pred_check
          %p540 = pneg %p223
        $region86: #{framework_fixed_mu_forward.1} parent=71 // pred_check_branch
          %542 = sbr.rel (%p540) target = $region88
        $region87: #{framework_fixed_mu_forward.1} parent=71 // pred_region
          %543 = dma.done %s536, 2048
        $region88: #{framework_fixed_mu_forward.1} parent=71 // pred_fallthru
          _
        %s544 = sand.u32 %s34, 1
        %s545 = scalar_lea.sflag [#allocation10], %s544
        %s546 = sand.u32 %s236, 1
        %s547 = smul.addr %s546, 128
        %s548 = scalar_lea.vmem [#allocation11], %s547
        // Predicated region
        $region89: #{framework_fixed_mu_forward.1} parent=71 // pred_check
          %p549 = pneg %p249
        $region90: #{framework_fixed_mu_forward.1} parent=71 // pred_check_branch
          %551 = sbr.rel (%p549) target = $region92
        $region91: #{framework_fixed_mu_forward.1} parent=71 // pred_region
          %552 = dma.done %s545, 2048
        $region92: #{framework_fixed_mu_forward.1} parent=71 // pred_fallthru
          _
        %s553 = sand.u32 %s288, 1
        %s554 = scalar_lea.sflag [#allocation13], %s553
        %s555 = sand.u32 %s288, 1
        %s556 = smul.addr %s555, 384
        %s557 = scalar_lea.vmem [#allocation12], %s556
        // Predicated region
        $region93: #{framework_fixed_mu_forward.1} parent=71 // pred_check
          %p558 = pneg %p301
        $region94: #{framework_fixed_mu_forward.1} parent=71 // pred_check_branch
          %560 = sbr.rel (%p558) target = $region96
        $region95: #{framework_fixed_mu_forward.1} parent=71 // pred_region
          %561 = dma.done %s554, 6144
        $region96: #{framework_fixed_mu_forward.1} parent=71 // pred_fallthru
          _
        %p562 = pneg %p50
        %p563 = pneg %p47
        %p564 = pneg %p71
        %p565 = pneg %p68
        %p566 = pneg %p92
        %p567 = pneg %p89
        %p568 = pneg %p113
        %p569 = pneg %p110
        %p570 = pneg %p134
        %p571 = pneg %p131
        %p572 = pneg %p155
        %p573 = pneg %p152
        %p574 = pneg %p176
        %p575 = pneg %p173
        %p576 = pneg %p197
        %p577 = pneg %p194
        %s578 = sand.u32 %s34, 1
        %s579 = scalar_lea.sflag [#allocation10], %s578
        %s580 = sand.u32 %s210, 1
        %s581 = smul.addr %s580, 128
        %s582 = scalar_lea.vmem [#allocation9], %s581
        %p583 = pneg %p223
        %p584 = pneg %p220
        %s585 = sand.u32 %s34, 1
        %s586 = scalar_lea.sflag [#allocation10], %s585
        %s587 = sand.u32 %s236, 1
        %s588 = smul.addr %s587, 128
        %s589 = scalar_lea.vmem [#allocation11], %s588
        %p590 = pneg %p249
        %p591 = pneg %p246
        %p592 = scmp.lt.s32.totalorder %s34, 2
        %s593 = scalar_select %p592, %s34, 2
        %s594 = scalar_lea.vmem %s10, %s593
        %p595 = pneg %p275
        %p596 = pneg %p272
        %s597 = sand.u32 %s288, 1
        %s598 = scalar_lea.sflag [#allocation13], %s597
        %s599 = sand.u32 %s288, 1
        %s600 = smul.addr %s599, 384
        %s601 = scalar_lea.vmem [#allocation12], %s600
        %p602 = pneg %p301
        %p603 = pneg %p298
        %p604 = scmp.lt.s32.totalorder %s34, 2
        %s605 = scalar_select %p604, %s34, 2
        %s606 = smul.addr %s605, 3
        %s607 = scalar_lea.vmem %s12, %s606
        %p608 = pneg %p327
        %p609 = pneg %p324
        %p610 = pneg %p348
        %p611 = pneg %p345
        %p612 = pneg %p369
        %p613 = pneg %p366
        %p614 = scmp.lt.s32.totalorder %s34, 2
        %s615 = scalar_select %p614, %s34, 2
        %s616 = scalar_lea.vmem %s10, %s615
        %p617 = scmp.lt.s32.totalorder %s34, 2
        %s618 = scalar_select %p617, %s34, 2
        %s619 = smul.addr %s618, 3
        %s620 = scalar_lea.vmem %s12, %s619
        %p621 = scmp.eq.s32.totalorder %s34, 0
        // Predicated region
        $region97: #{framework_fixed_mu_forward.1} parent=71 // pred_check
          %p622 = pneg %p621
        $region98: #{framework_fixed_mu_forward.1} parent=71 // pred_check_branch
          %624 = sbr.rel (%p622) target = $region100
        $region99: #{framework_fixed_mu_forward.1} parent=71 // pred_region
          %v625 = vld [vmem:[#allocation4] sm:$0xff]
          %v626 = vld [vmem:[#allocation4 + $0x8] sm:$0xff]
          %v627 = vld [vmem:[%s4] sm:$0xff]
          %v628 = vld [vmem:[%s4 + $0x8] sm:$0xff]
          %v629 = vld [vmem:[%s4 + $0x10] sm:$0xff]
          %v630 = vld [vmem:[%s4 + $0x18] sm:$0xff]
          %v631 = vld [vmem:[%s5] sm:$0x1]
          %v633 = vlaneseq
          %v634 = vshrl.u32 %v633, 7
          %v635 = vsub.s32 0, %v634
          %v636 = vrot.slane %v631, %v635
          %vm638 = vcmask 261120
          %v640 = vsel %vm638, %v625, 0
          %v643 = vsel %vm638, %v626, 0
          %645 = vmatprep.subr.mxu0 0.0
          %646 = vmatpush1.msra.mxu0 %v627
          %647 = vmatprep.subr.mxu0 0.0
          %648 = vmatpush1.msra.mxu0 %v628
          %649 = vmatprep.subr.mxu0 0.0
          %650 = vmatpush1.msra.mxu0 %v629
          %651 = vmatprep.subr.mxu0 0.0
          %652 = vmatpush1.msra.mxu0 %v630
          %653 = vmatprep.subr.mxu0 0.0
          %654 = vmatpush1.msra.mxu0 0.0
          %655 = vmatprep.subr.mxu0 0.0
          %656 = vmatpush1.msra.mxu0 0.0
          %657 = vmatprep.subr.mxu0 0.0
          %658 = vmatpush1.msra.mxu0 0.0
          %659 = vmatprep.subr.mxu0 0.0
          %660 = vmatpush1.msra.mxu0 0.0
          %661 = vmatprep.subr.mxu0 0.0
          %662 = vmatpush1.msra.mxu0 0.0
          %663 = vmatprep.subr.mxu0 0.0
          %664 = vmatpush1.msra.mxu0 0.0
          %665 = vmatprep.subr.mxu0 0.0
          %666 = vmatpush1.msra.mxu0 0.0
          %667 = vmatprep.subr.mxu0 0.0
          %668 = vmatpush1.msra.mxu0 0.0
          %669 = vmatprep.subr.mxu0 0.0
          %670 = vmatpush1.msra.mxu0 0.0
          %671 = vmatprep.subr.mxu0 0.0
          %672 = vmatpush1.msra.mxu0 0.0
          %673 = vmatprep.subr.mxu0 0.0
          %674 = vmatpush1.msra.mxu0 0.0
          %675 = vmatprep.subr.mxu0 0.0
          %676 = vmatpush1.msra.mxu0 0.0
          %677 = vmatprep.subr.mxu0 0.0
          %678 = vmatpush1.msra.mxu0 0.0
          %679 = vmatprep.subr.mxu0 0.0
          %680 = vmatpush1.msra.mxu0 0.0
          %681 = vmatprep.subr.mxu0 0.0
          %682 = vmatpush1.msra.mxu0 0.0
          %683 = vmatprep.subr.mxu0 0.0
          %684 = vmatpush1.msra.mxu0 0.0
          %685 = vmatprep.subr.mxu0 0.0
          %686 = vmatpush1.msra.mxu0 0.0
          %687 = vmatprep.subr.mxu0 0.0
          %688 = vmatpush1.msra.mxu0 0.0
          %689 = vmatprep.subr.mxu0 0.0
          %690 = vmatpush1.msra.mxu0 0.0
          %691 = vmatprep.subr.mxu0 0.0
          %692 = vmatpush1.msra.mxu0 0.0
          %693 = vmatprep.subr.mxu0 0.0
          %694 = vmatpush1.msra.mxu0 0.0
          %695 = vmatprep.subr.mxu0 0.0
          %696 = vmatpush1.msra.mxu0 0.0
          %697 = vmatprep.subr.mxu0 0.0
          %698 = vmatpush1.msra.mxu0 0.0
          %699 = vmatprep.subr.mxu0 0.0
          %700 = vmatpush1.msra.mxu0 0.0
          %701 = vmatprep.subr.mxu0 0.0
          %702 = vmatpush1.msra.mxu0 0.0
          %703 = vmatprep.subr.mxu0 0.0
          %704 = vmatpush1.msra.mxu0 0.0
          %705 = vmatprep.subr.mxu0 0.0
          %706 = vmatpush1.msra.mxu0 0.0
          %707 = vmatprep.subr.mxu0 0.0
          %708 = vmatpush1.msra.mxu0 0.0
          %709 = vmatprep.mubr.f32.mxu0 0.0
          %710 = vmatmul.mubr.f32.gmra.mrb[0].mxu0 %v640
          %v711 = vpop.f32.mrb[0].mxu0
          %v712 = vadd.f32 %v636, %v711
          %v713 = vpop.f32.mrb[0].mxu0
          %714 = vmatprep.mubr.f32.mxu0 0.0
          %715 = vmatmul.mubr.f32.gmra.mrb[0].mxu0 %v643
          %v716 = vpop.f32.mrb[0].mxu0
          %v717 = vadd.f32 %v636, %v716
          %v718 = vpop.f32.mrb[0].mxu0
          %719 = vdwg.mxu0
          %vm720 = vcmp.ge.f32.partialorder %v712, 0.0
          %vm721 = vcmp.ge.f32.partialorder %v717, 0.0
          %v722 = vmul.f32 %v712, 0.01
          %v723 = vmul.f32 %v717, 0.01
          %v724 = vsel %vm720, %v712, %v722
          %v725 = vsel %vm721, %v717, %v723
          %726 = vst [vmem:[#allocation2] sm:$0xff] %v724
          %727 = vst [vmem:[#allocation2 + $0x8] sm:$0xff] %v725
          %v728 = vld [vmem:[#allocation6] sm:$0xff]
          %v729 = vld [vmem:[#allocation8] sm:$0xff]
          %v730 = vld [vmem:[#allocation8 + $0x8] sm:$0xff]
          %v731 = vld [vmem:[%s7] sm:$0x1]
          %v733 = vlaneseq
          %v734 = vshrl.u32 %v733, 7
          %v735 = vsub.s32 0, %v734
          %v736 = vrot.slane %v731, %v735
          %vm738 = vcmask 130048
          %v740 = vsel %vm738, %v728, 0
          %742 = vmatprep.subr.mxu0 0.0
          %743 = vmatpush1.msra.mxu0 %v729
          %744 = vmatprep.subr.mxu0 0.0
          %745 = vmatpush1.msra.mxu0 %v730
          %746 = vmatprep.subr.mxu0 0.0
          %747 = vmatpush1.msra.mxu0 0.0
          %748 = vmatprep.subr.mxu0 0.0
          %749 = vmatpush1.msra.mxu0 0.0
          %750 = vmatprep.subr.mxu0 0.0
          %751 = vmatpush1.msra.mxu0 0.0
          %752 = vmatprep.subr.mxu0 0.0
          %753 = vmatpush1.msra.mxu0 0.0
          %754 = vmatprep.subr.mxu0 0.0
          %755 = vmatpush1.msra.mxu0 0.0
          %756 = vmatprep.subr.mxu0 0.0
          %757 = vmatpush1.msra.mxu0 0.0
          %758 = vmatprep.subr.mxu0 0.0
          %759 = vmatpush1.msra.mxu0 0.0
          %760 = vmatprep.subr.mxu0 0.0
          %761 = vmatpush1.msra.mxu0 0.0
          %762 = vmatprep.subr.mxu0 0.0
          %763 = vmatpush1.msra.mxu0 0.0
          %764 = vmatprep.subr.mxu0 0.0
          %765 = vmatpush1.msra.mxu0 0.0
          %766 = vmatprep.subr.mxu0 0.0
          %767 = vmatpush1.msra.mxu0 0.0
          %768 = vmatprep.subr.mxu0 0.0
          %769 = vmatpush1.msra.mxu0 0.0
          %770 = vmatprep.subr.mxu0 0.0
          %771 = vmatpush1.msra.mxu0 0.0
          %772 = vmatprep.subr.mxu0 0.0
          %773 = vmatpush1.msra.mxu0 0.0
          %774 = vmatprep.subr.mxu0 0.0
          %775 = vmatpush1.msra.mxu0 0.0
          %776 = vmatprep.subr.mxu0 0.0
          %777 = vmatpush1.msra.mxu0 0.0
          %778 = vmatprep.subr.mxu0 0.0
          %779 = vmatpush1.msra.mxu0 0.0
          %780 = vmatprep.subr.mxu0 0.0
          %781 = vmatpush1.msra.mxu0 0.0
          %782 = vmatprep.subr.mxu0 0.0
          %783 = vmatpush1.msra.mxu0 0.0
          %784 = vmatprep.subr.mxu0 0.0
          %785 = vmatpush1.msra.mxu0 0.0
          %786 = vmatprep.subr.mxu0 0.0
          %787 = vmatpush1.msra.mxu0 0.0
          %788 = vmatprep.subr.mxu0 0.0
          %789 = vmatpush1.msra.mxu0 0.0
          %790 = vmatprep.subr.mxu0 0.0
          %791 = vmatpush1.msra.mxu0 0.0
          %792 = vmatprep.subr.mxu0 0.0
          %793 = vmatpush1.msra.mxu0 0.0
          %794 = vmatprep.subr.mxu0 0.0
          %795 = vmatpush1.msra.mxu0 0.0
          %796 = vmatprep.subr.mxu0 0.0
          %797 = vmatpush1.msra.mxu0 0.0
          %798 = vmatprep.subr.mxu0 0.0
          %799 = vmatpush1.msra.mxu0 0.0
          %800 = vmatprep.subr.mxu0 0.0
          %801 = vmatpush1.msra.mxu0 0.0
          %802 = vmatprep.subr.mxu0 0.0
          %803 = vmatpush1.msra.mxu0 0.0
          %804 = vmatprep.subr.mxu0 0.0
          %805 = vmatpush1.msra.mxu0 0.0
          %806 = vmatprep.mubr.f32.mxu0 0.0
          %807 = vmatmul.mubr.f32.gmra.mrb[0].mxu0 %v740
          %v808 = vpop.f32.mrb[0].mxu0
          %v809 = vadd.f32 %v736, %v808
          %v810 = vpop.f32.mrb[0].mxu0
          %811 = vdwg.mxu0
          %vm812 = vcmp.ge.f32.partialorder %v809, 0.0
          %v813 = vmul.f32 %v809, 0.01
          %v814 = vsel %vm812, %v809, %v813
          %815 = vst [vmem:[#allocation3] sm:$0xff] %v814
        $region100: #{framework_fixed_mu_forward.1} parent=71 // pred_fallthru
          _
        %v816 = vld [vmem:[#allocation2] sm:$0xff]
        %v817 = vld [vmem:[#allocation2 + $0x8] sm:$0xff]
        %v818 = vld [vmem:[%s2] sm:$0xff]
        %vm819 = vcmask 130048
        %v821 = vsel %vm819, %v818, 0
        %823 = vmatprep.subr.mxu0 0.0
        %824 = vmatpush1.msra.mxu0 %v816
        %825 = vmatprep.subr.mxu0 0.0
        %826 = vmatpush1.msra.mxu0 %v817
        %827 = vmatprep.subr.mxu0 0.0
        %828 = vmatpush1.msra.mxu0 0.0
        %829 = vmatprep.subr.mxu0 0.0
        %830 = vmatpush1.msra.mxu0 0.0
        %831 = vmatprep.subr.mxu0 0.0
        %832 = vmatpush1.msra.mxu0 0.0
        %833 = vmatprep.subr.mxu0 0.0
        %834 = vmatpush1.msra.mxu0 0.0
        %835 = vmatprep.subr.mxu0 0.0
        %836 = vmatpush1.msra.mxu0 0.0
        %837 = vmatprep.subr.mxu0 0.0
        %838 = vmatpush1.msra.mxu0 0.0
        %839 = vmatprep.subr.mxu0 0.0
        %840 = vmatpush1.msra.mxu0 0.0
        %841 = vmatprep.subr.mxu0 0.0
        %842 = vmatpush1.msra.mxu0 0.0
        %843 = vmatprep.subr.mxu0 0.0
        %844 = vmatpush1.msra.mxu0 0.0
        %845 = vmatprep.subr.mxu0 0.0
        %846 = vmatpush1.msra.mxu0 0.0
        %847 = vmatprep.subr.mxu0 0.0
        %848 = vmatpush1.msra.mxu0 0.0
        %849 = vmatprep.subr.mxu0 0.0
        %850 = vmatpush1.msra.mxu0 0.0
        %851 = vmatprep.subr.mxu0 0.0
        %852 = vmatpush1.msra.mxu0 0.0
        %853 = vmatprep.subr.mxu0 0.0
        %854 = vmatpush1.msra.mxu0 0.0
        %855 = vmatprep.subr.mxu0 0.0
        %856 = vmatpush1.msra.mxu0 0.0
        %857 = vmatprep.subr.mxu0 0.0
        %858 = vmatpush1.msra.mxu0 0.0
        %859 = vmatprep.subr.mxu0 0.0
        %860 = vmatpush1.msra.mxu0 0.0
        %861 = vmatprep.subr.mxu0 0.0
        %862 = vmatpush1.msra.mxu0 0.0
        %863 = vmatprep.subr.mxu0 0.0
        %864 = vmatpush1.msra.mxu0 0.0
        %865 = vmatprep.subr.mxu0 0.0
        %866 = vmatpush1.msra.mxu0 0.0
        %867 = vmatprep.subr.mxu0 0.0
        %868 = vmatpush1.msra.mxu0 0.0
        %869 = vmatprep.subr.mxu0 0.0
        %870 = vmatpush1.msra.mxu0 0.0
        %871 = vmatprep.subr.mxu0 0.0
        %872 = vmatpush1.msra.mxu0 0.0
        %873 = vmatprep.subr.mxu0 0.0
        %874 = vmatpush1.msra.mxu0 0.0
        %875 = vmatprep.subr.mxu0 0.0
        %876 = vmatpush1.msra.mxu0 0.0
        %877 = vmatprep.subr.mxu0 0.0
        %878 = vmatpush1.msra.mxu0 0.0
        %879 = vmatprep.subr.mxu0 0.0
        %880 = vmatpush1.msra.mxu0 0.0
        %881 = vmatprep.subr.mxu0 0.0
        %882 = vmatpush1.msra.mxu0 0.0
        %883 = vmatprep.subr.mxu0 0.0
        %884 = vmatpush1.msra.mxu0 0.0
        %885 = vmatprep.subr.mxu0 0.0
        %886 = vmatpush1.msra.mxu0 0.0
        %887 = vmatprep.mubr.f32.mxu0 0.0
        %888 = vmatmul.mubr.f32.gmra.mrb[0].mxu0 %v821
        %v889 = vpop.f32.mrb[0].mxu0
        %v890 = vadd.f32 0.0, %v889
        %v891 = vpop.f32.mrb[0].mxu0
        %892 = vdwg.mxu0
        %v893 = vld [vmem:[%s539] sm:$0xff]
        %v894 = vld [vmem:[%s539 + $0x8] sm:$0xff]
        %v895 = vld [vmem:[%s539 + $0x10] sm:$0xff]
        %v896 = vld [vmem:[%s539 + $0x18] sm:$0xff]
        %v897 = vld [vmem:[%s539 + $0x20] sm:$0xff]
        %v898 = vld [vmem:[%s539 + $0x28] sm:$0xff]
        %v899 = vld [vmem:[%s539 + $0x30] sm:$0xff]
        %v900 = vld [vmem:[%s539 + $0x38] sm:$0xff]
        %v901 = vld [vmem:[%s539 + $0x40] sm:$0xff]
        %v902 = vld [vmem:[%s539 + $0x48] sm:$0xff]
        %v903 = vld [vmem:[%s539 + $0x50] sm:$0xff]
        %v904 = vld [vmem:[%s539 + $0x58] sm:$0xff]
        %v905 = vld [vmem:[%s539 + $0x60] sm:$0xff]
        %v906 = vld [vmem:[%s539 + $0x68] sm:$0xff]
        %v907 = vld [vmem:[%s539 + $0x70] sm:$0xff]
        %v908 = vld [vmem:[%s539 + $0x78] sm:$0xff]
        %909 = vmatprep.subr.mxu0 0.0
        %910 = vmatpush1.msra.mxu0 %v893
        %911 = vmatprep.subr.mxu0 0.0
        %912 = vmatpush1.msra.mxu0 %v894
        %913 = vmatprep.subr.mxu0 0.0
        %914 = vmatpush1.msra.mxu0 %v895
        %915 = vmatprep.subr.mxu0 0.0
        %916 = vmatpush1.msra.mxu0 %v896
        %917 = vmatprep.subr.mxu0 0.0
        %918 = vmatpush1.msra.mxu0 %v897
        %919 = vmatprep.subr.mxu0 0.0
        %920 = vmatpush1.msra.mxu0 %v898
        %921 = vmatprep.subr.mxu0 0.0
        %922 = vmatpush1.msra.mxu0 %v899
        %923 = vmatprep.subr.mxu0 0.0
        %924 = vmatpush1.msra.mxu0 %v900
        %925 = vmatprep.subr.mxu0 0.0
        %926 = vmatpush1.msra.mxu0 %v901
        %927 = vmatprep.subr.mxu0 0.0
        %928 = vmatpush1.msra.mxu0 %v902
        %929 = vmatprep.subr.mxu0 0.0
        %930 = vmatpush1.msra.mxu0 %v903
        %931 = vmatprep.subr.mxu0 0.0
        %932 = vmatpush1.msra.mxu0 %v904
        %933 = vmatprep.subr.mxu0 0.0
        %934 = vmatpush1.msra.mxu0 %v905
        %935 = vmatprep.subr.mxu0 0.0
        %936 = vmatpush1.msra.mxu0 %v906
        %937 = vmatprep.subr.mxu0 0.0
        %938 = vmatpush1.msra.mxu0 %v907
        %939 = vmatprep.subr.mxu0 0.0
        %940 = vmatpush1.msra.mxu0 %v908
        %941 = vmatprep.subr.mxu0 0.0
        %942 = vmatpush1.msra.mxu0 0.0
        %943 = vmatprep.subr.mxu0 0.0
        %944 = vmatpush1.msra.mxu0 0.0
        %945 = vmatprep.subr.mxu0 0.0
        %946 = vmatpush1.msra.mxu0 0.0
        %947 = vmatprep.subr.mxu0 0.0
        %948 = vmatpush1.msra.mxu0 0.0
        %949 = vmatprep.subr.mxu0 0.0
        %950 = vmatpush1.msra.mxu0 0.0
        %951 = vmatprep.subr.mxu0 0.0
        %952 = vmatpush1.msra.mxu0 0.0
        %953 = vmatprep.subr.mxu0 0.0
        %954 = vmatpush1.msra.mxu0 0.0
        %955 = vmatprep.subr.mxu0 0.0
        %956 = vmatpush1.msra.mxu0 0.0
        %957 = vmatprep.subr.mxu0 0.0
        %958 = vmatpush1.msra.mxu0 0.0
        %959 = vmatprep.subr.mxu0 0.0
        %960 = vmatpush1.msra.mxu0 0.0
        %961 = vmatprep.subr.mxu0 0.0
        %962 = vmatpush1.msra.mxu0 0.0
        %963 = vmatprep.subr.mxu0 0.0
        %964 = vmatpush1.msra.mxu0 0.0
        %965 = vmatprep.subr.mxu0 0.0
        %966 = vmatpush1.msra.mxu0 0.0
        %967 = vmatprep.subr.mxu0 0.0
        %968 = vmatpush1.msra.mxu0 0.0
        %969 = vmatprep.subr.mxu0 0.0
        %970 = vmatpush1.msra.mxu0 0.0
        %971 = vmatprep.subr.mxu0 0.0
        %972 = vmatpush1.msra.mxu0 0.0
        %973 = vmatprep.mubr.f32.mxu0 0.0
        %974 = vmatmul.mubr.f32.gmra.mrb[0].mxu0 %v890
        %v975 = vpop.f32.mrb[0].mxu0
        %v976 = vadd.f32 0.0, %v975
        %v977 = vpop.f32.mrb[0].mxu0
        %978 = vdwg.mxu0
        %vm979 = vcmp.ge.f32.partialorder %v976, 0.0
        %v980 = vmul.f32 %v976, 0.01
        %v981 = vsel %vm979, %v976, %v980
        %v982 = vsub.f32 %v981, 1.0
        %v983 = vmul.f32 %v982, 0.75
        %v984 = vmul.f32 %v983, 1.442695
        %v985 = vpow.pop %v984
        %986 = vst [vmem:[#allocation3] sm:$0xff] %v985
        %v987 = vld [vmem:[%s548] sm:$0xff]
        %v988 = vld [vmem:[%s548 + $0x8] sm:$0xff]
        %v989 = vld [vmem:[%s548 + $0x10] sm:$0xff]
        %v990 = vld [vmem:[%s548 + $0x18] sm:$0xff]
        %v991 = vld [vmem:[%s548 + $0x20] sm:$0xff]
        %v992 = vld [vmem:[%s548 + $0x28] sm:$0xff]
        %v993 = vld [vmem:[%s548 + $0x30] sm:$0xff]
        %v994 = vld [vmem:[%s548 + $0x38] sm:$0xff]
        %v995 = vld [vmem:[%s548 + $0x40] sm:$0xff]
        %v996 = vld [vmem:[%s548 + $0x48] sm:$0xff]
        %v997 = vld [vmem:[%s548 + $0x50] sm:$0xff]
        %v998 = vld [vmem:[%s548 + $0x58] sm:$0xff]
        %v999 = vld [vmem:[%s548 + $0x60] sm:$0xff]
        %v1000 = vld [vmem:[%s548 + $0x68] sm:$0xff]
        %v1001 = vld [vmem:[%s548 + $0x70] sm:$0xff]
        %v1002 = vld [vmem:[%s548 + $0x78] sm:$0xff]
        %v1003 = vld [vmem:[%s616] sm:$0x1]
        %v1005 = vlaneseq
        %v1006 = vshrl.u32 %v1005, 7
        %v1007 = vsub.s32 0, %v1006
        %v1008 = vrot.slane %v1003, %v1007
        %1010 = vmatprep.subr.mxu0 0.0
        %1011 = vmatpush1.msra.mxu0 %v987
        %1012 = vmatprep.subr.mxu0 0.0
        %1013 = vmatpush1.msra.mxu0 %v988
        %1014 = vmatprep.subr.mxu0 0.0
        %1015 = vmatpush1.msra.mxu0 %v989
        %1016 = vmatprep.subr.mxu0 0.0
        %1017 = vmatpush1.msra.mxu0 %v990
        %1018 = vmatprep.subr.mxu0 0.0
        %1019 = vmatpush1.msra.mxu0 %v991
        %1020 = vmatprep.subr.mxu0 0.0
        %1021 = vmatpush1.msra.mxu0 %v992
        %1022 = vmatprep.subr.mxu0 0.0
        %1023 = vmatpush1.msra.mxu0 %v993
        %1024 = vmatprep.subr.mxu0 0.0
        %1025 = vmatpush1.msra.mxu0 %v994
        %1026 = vmatprep.subr.mxu0 0.0
        %1027 = vmatpush1.msra.mxu0 %v995
        %1028 = vmatprep.subr.mxu0 0.0
        %1029 = vmatpush1.msra.mxu0 %v996
        %1030 = vmatprep.subr.mxu0 0.0
        %1031 = vmatpush1.msra.mxu0 %v997
        %1032 = vmatprep.subr.mxu0 0.0
        %1033 = vmatpush1.msra.mxu0 %v998
        %1034 = vmatprep.subr.mxu0 0.0
        %1035 = vmatpush1.msra.mxu0 %v999
        %1036 = vmatprep.subr.mxu0 0.0
        %1037 = vmatpush1.msra.mxu0 %v1000
        %1038 = vmatprep.subr.mxu0 0.0
        %1039 = vmatpush1.msra.mxu0 %v1001
        %1040 = vmatprep.subr.mxu0 0.0
        %1041 = vmatpush1.msra.mxu0 %v1002
        %1042 = vmatprep.subr.mxu0 0.0
        %1043 = vmatpush1.msra.mxu0 0.0
        %1044 = vmatprep.subr.mxu0 0.0
        %1045 = vmatpush1.msra.mxu0 0.0
        %1046 = vmatprep.subr.mxu0 0.0
        %1047 = vmatpush1.msra.mxu0 0.0
        %1048 = vmatprep.subr.mxu0 0.0
        %1049 = vmatpush1.msra.mxu0 0.0
        %1050 = vmatprep.subr.mxu0 0.0
        %1051 = vmatpush1.msra.mxu0 0.0
        %1052 = vmatprep.subr.mxu0 0.0
        %1053 = vmatpush1.msra.mxu0 0.0
        %1054 = vmatprep.subr.mxu0 0.0
        %1055 = vmatpush1.msra.mxu0 0.0
        %1056 = vmatprep.subr.mxu0 0.0
        %1057 = vmatpush1.msra.mxu0 0.0
        %1058 = vmatprep.subr.mxu0 0.0
        %1059 = vmatpush1.msra.mxu0 0.0
        %1060 = vmatprep.subr.mxu0 0.0
        %1061 = vmatpush1.msra.mxu0 0.0
        %1062 = vmatprep.subr.mxu0 0.0
        %1063 = vmatpush1.msra.mxu0 0.0
        %1064 = vmatprep.subr.mxu0 0.0
        %1065 = vmatpush1.msra.mxu0 0.0
        %1066 = vmatprep.subr.mxu0 0.0
        %1067 = vmatpush1.msra.mxu0 0.0
        %1068 = vmatprep.subr.mxu0 0.0
        %1069 = vmatpush1.msra.mxu0 0.0
        %1070 = vmatprep.subr.mxu0 0.0
        %1071 = vmatpush1.msra.mxu0 0.0
        %1072 = vmatprep.subr.mxu0 0.0
        %1073 = vmatpush1.msra.mxu0 0.0
        %1074 = vmatprep.mubr.f32.mxu0 0.0
        %1075 = vmatmul.mubr.f32.gmra.mrb[0].mxu0 %v816
        %v1076 = vpop.f32.mrb[0].mxu0
        %v1077 = vadd.f32 %v1008, %v1076
        %v1078 = vpop.f32.mrb[0].mxu0
        %1079 = vmatprep.mubr.f32.mxu0 0.0
        %1080 = vmatmul.mubr.f32.gmra.mrb[0].mxu0 %v817
        %v1081 = vpop.f32.mrb[0].mxu0
        %v1082 = vadd.f32 %v1008, %v1081
        %v1083 = vpop.f32.mrb[0].mxu0
        %1084 = vdwg.mxu0
        %vm1085 = vcmp.ge.f32.partialorder %v1077, 0.0
        %vm1086 = vcmp.ge.f32.partialorder %v1082, 0.0
        %v1087 = vmul.f32 %v1077, 0.01
        %v1088 = vmul.f32 %v1082, 0.01
        %v1089 = vsel %vm1085, %v1077, %v1087
        %v1090 = vsel %vm1086, %v1082, %v1088
        %v1091 = vld [vmem:[%s3] sm:$0xff]
        %v1092 = vld [vmem:[%s3 + $0x8] sm:$0xff]
        %vm1093 = vcmask 64512
        %v1095 = vsel %vm1093, %v1091, 0
        %v1098 = vsel %vm1093, %v1092, 0
        %1100 = vmatprep.subr.mxu0 0.0
        %1101 = vmatpush1.msra.mxu0 %v985
        %1102 = vmatprep.subr.mxu0 0.0
        %1103 = vmatpush1.msra.mxu0 0.0
        %1104 = vmatprep.subr.mxu0 0.0
        %1105 = vmatpush1.msra.mxu0 0.0
        %1106 = vmatprep.subr.mxu0 0.0
        %1107 = vmatpush1.msra.mxu0 0.0
        %1108 = vmatprep.subr.mxu0 0.0
        %1109 = vmatpush1.msra.mxu0 0.0
        %1110 = vmatprep.subr.mxu0 0.0
        %1111 = vmatpush1.msra.mxu0 0.0
        %1112 = vmatprep.subr.mxu0 0.0
        %1113 = vmatpush1.msra.mxu0 0.0
        %1114 = vmatprep.subr.mxu0 0.0
        %1115 = vmatpush1.msra.mxu0 0.0
        %1116 = vmatprep.subr.mxu0 0.0
        %1117 = vmatpush1.msra.mxu0 0.0
        %1118 = vmatprep.subr.mxu0 0.0
        %1119 = vmatpush1.msra.mxu0 0.0
        %1120 = vmatprep.subr.mxu0 0.0
        %1121 = vmatpush1.msra.mxu0 0.0
        %1122 = vmatprep.subr.mxu0 0.0
        %1123 = vmatpush1.msra.mxu0 0.0
        %1124 = vmatprep.subr.mxu0 0.0
        %1125 = vmatpush1.msra.mxu0 0.0
        %1126 = vmatprep.subr.mxu0 0.0
        %1127 = vmatpush1.msra.mxu0 0.0
        %1128 = vmatprep.subr.mxu0 0.0
        %1129 = vmatpush1.msra.mxu0 0.0
        %1130 = vmatprep.subr.mxu0 0.0
        %1131 = vmatpush1.msra.mxu0 0.0
        %1132 = vmatprep.subr.mxu0 0.0
        %1133 = vmatpush1.msra.mxu0 0.0
        %1134 = vmatprep.subr.mxu0 0.0
        %1135 = vmatpush1.msra.mxu0 0.0
        %1136 = vmatprep.subr.mxu0 0.0
        %1137 = vmatpush1.msra.mxu0 0.0
        %1138 = vmatprep.subr.mxu0 0.0
        %1139 = vmatpush1.msra.mxu0 0.0
        %1140 = vmatprep.subr.mxu0 0.0
        %1141 = vmatpush1.msra.mxu0 0.0
        %1142 = vmatprep.subr.mxu0 0.0
        %1143 = vmatpush1.msra.mxu0 0.0
        %1144 = vmatprep.subr.mxu0 0.0
        %1145 = vmatpush1.msra.mxu0 0.0
        %1146 = vmatprep.subr.mxu0 0.0
        %1147 = vmatpush1.msra.mxu0 0.0
        %1148 = vmatprep.subr.mxu0 0.0
        %1149 = vmatpush1.msra.mxu0 0.0
        %1150 = vmatprep.subr.mxu0 0.0
        %1151 = vmatpush1.msra.mxu0 0.0
        %1152 = vmatprep.subr.mxu0 0.0
        %1153 = vmatpush1.msra.mxu0 0.0
        %1154 = vmatprep.subr.mxu0 0.0
        %1155 = vmatpush1.msra.mxu0 0.0
        %1156 = vmatprep.subr.mxu0 0.0
        %1157 = vmatpush1.msra.mxu0 0.0
        %1158 = vmatprep.subr.mxu0 0.0
        %1159 = vmatpush1.msra.mxu0 0.0
        %1160 = vmatprep.subr.mxu0 0.0
        %1161 = vmatpush1.msra.mxu0 0.0
        %1162 = vmatprep.subr.mxu0 0.0
        %1163 = vmatpush1.msra.mxu0 0.0
        %1164 = vmatprep.mubr.f32.mxu0 0.0
        %1165 = vmatmul.mubr.f32.gmra.mrb[0].mxu0 %v1095
        %v1166 = vpop.f32.mrb[0].mxu0
        %v1167 = vadd.f32 0.0, %v1166
        %v1168 = vpop.f32.mrb[0].mxu0
        %1169 = vmatprep.mubr.f32.mxu0 0.0
        %1170 = vmatmul.mubr.f32.gmra.mrb[0].mxu0 %v1098
        %v1171 = vpop.f32.mrb[0].mxu0
        %v1172 = vadd.f32 0.0, %v1171
        %v1173 = vpop.f32.mrb[0].mxu0
        %1174 = vdwg.mxu0
        %v1175 = vld [vmem:[%s557] sm:$0xff]
        %v1176 = vld [vmem:[%s557 + $0x8] sm:$0xff]
        %v1177 = vld [vmem:[%s557 + $0x10] sm:$0xff]
        %v1178 = vld [vmem:[%s557 + $0x18] sm:$0xff]
        %v1179 = vld [vmem:[%s557 + $0x20] sm:$0xff]
        %v1180 = vld [vmem:[%s557 + $0x28] sm:$0xff]
        %v1181 = vld [vmem:[%s557 + $0x30] sm:$0xff]
        %v1182 = vld [vmem:[%s557 + $0x38] sm:$0xff]
        %v1183 = vld [vmem:[%s557 + $0x40] sm:$0xff]
        %v1184 = vld [vmem:[%s557 + $0x48] sm:$0xff]
        %v1185 = vld [vmem:[%s557 + $0x50] sm:$0xff]
        %v1186 = vld [vmem:[%s557 + $0x58] sm:$0xff]
        %v1187 = vld [vmem:[%s557 + $0x60] sm:$0xff]
        %v1188 = vld [vmem:[%s557 + $0x68] sm:$0xff]
        %v1189 = vld [vmem:[%s557 + $0x70] sm:$0xff]
        %v1190 = vld [vmem:[%s557 + $0x78] sm:$0xff]
        %v1191 = vld [vmem:[%s557 + $0x80] sm:$0xff]
        %v1192 = vld [vmem:[%s557 + $0x88] sm:$0xff]
        %v1193 = vld [vmem:[%s557 + $0x90] sm:$0xff]
        %v1194 = vld [vmem:[%s557 + $0x98] sm:$0xff]
        %v1195 = vld [vmem:[%s557 + $0xa0] sm:$0xff]
        %v1196 = vld [vmem:[%s557 + $0xa8] sm:$0xff]
        %v1197 = vld [vmem:[%s557 + $0xb0] sm:$0xff]
        %v1198 = vld [vmem:[%s557 + $0xb8] sm:$0xff]
        %v1199 = vld [vmem:[%s557 + $0xc0] sm:$0xff]
        %v1200 = vld [vmem:[%s557 + $0xc8] sm:$0xff]
        %v1201 = vld [vmem:[%s557 + $0xd0] sm:$0xff]
        %v1202 = vld [vmem:[%s557 + $0xd8] sm:$0xff]
        %v1203 = vld [vmem:[%s557 + $0xe0] sm:$0xff]
        %v1204 = vld [vmem:[%s557 + $0xe8] sm:$0xff]
        %v1205 = vld [vmem:[%s557 + $0xf0] sm:$0xff]
        %v1206 = vld [vmem:[%s557 + $0xf8] sm:$0xff]
        %v1207 = vld [vmem:[%s557 + $0x100] sm:$0xff]
        %v1208 = vld [vmem:[%s557 + $0x108] sm:$0xff]
        %v1209 = vld [vmem:[%s557 + $0x110] sm:$0xff]
        %v1210 = vld [vmem:[%s557 + $0x118] sm:$0xff]
        %v1211 = vld [vmem:[%s557 + $0x120] sm:$0xff]
        %v1212 = vld [vmem:[%s557 + $0x128] sm:$0xff]
        %v1213 = vld [vmem:[%s557 + $0x130] sm:$0xff]
        %v1214 = vld [vmem:[%s557 + $0x138] sm:$0xff]
        %v1215 = vld [vmem:[%s557 + $0x140] sm:$0xff]
        %v1216 = vld [vmem:[%s557 + $0x148] sm:$0xff]
        %v1217 = vld [vmem:[%s557 + $0x150] sm:$0xff]
        %v1218 = vld [vmem:[%s557 + $0x158] sm:$0xff]
        %v1219 = vld [vmem:[%s557 + $0x160] sm:$0xff]
        %v1220 = vld [vmem:[%s557 + $0x168] sm:$0xff]
        %v1221 = vld [vmem:[%s557 + $0x170] sm:$0xff]
        %v1222 = vld [vmem:[%s557 + $0x178] sm:$0xff]
        %v1223 = vld [vmem:[%s620] sm:$0x7]
        %v1225 = vlaneseq
        %v1226 = vshrl.u32 %v1225, 7
        %v1227 = vsub.s32 0, %v1226
        %v1228 = vrot.slane %v1223, %v1227
        %v1229 = vlaneseq
        %v1230 = vshrl.u32 %v1229, 7
        %v1231 = vsub.s32 1, %v1230
        %v1232 = vrot.slane %v1223, %v1231
        %v1233 = vlaneseq
        %v1234 = vshrl.u32 %v1233, 7
        %v1235 = vsub.s32 2, %v1234
        %v1236 = vrot.slane %v1223, %v1235
        %1240 = vmatprep.subr.mxu0 %v1176
        %1241 = vmatpush1.msra.mxu0 %v1175
        %1242 = vmatprep.subr.mxu0 %v1179
        %1243 = vmatpush1.msra.mxu0 %v1178
        %1244 = vmatprep.subr.mxu0 %v1182
        %1245 = vmatpush1.msra.mxu0 %v1181
        %1246 = vmatprep.subr.mxu0 %v1185
        %1247 = vmatpush1.msra.mxu0 %v1184
        %1248 = vmatprep.subr.mxu0 %v1188
        %1249 = vmatpush1.msra.mxu0 %v1187
        %1250 = vmatprep.subr.mxu0 %v1191
        %1251 = vmatpush1.msra.mxu0 %v1190
        %1252 = vmatprep.subr.mxu0 %v1194
        %1253 = vmatpush1.msra.mxu0 %v1193
        %1254 = vmatprep.subr.mxu0 %v1197
        %1255 = vmatpush1.msra.mxu0 %v1196
        %1256 = vmatprep.subr.mxu0 %v1200
        %1257 = vmatpush1.msra.mxu0 %v1199
        %1258 = vmatprep.subr.mxu0 %v1203
        %1259 = vmatpush1.msra.mxu0 %v1202
        %1260 = vmatprep.subr.mxu0 %v1206
        %1261 = vmatpush1.msra.mxu0 %v1205
        %1262 = vmatprep.subr.mxu0 %v1209
        %1263 = vmatpush1.msra.mxu0 %v1208
        %1264 = vmatprep.subr.mxu0 %v1212
        %1265 = vmatpush1.msra.mxu0 %v1211
        %1266 = vmatprep.subr.mxu0 %v1215
        %1267 = vmatpush1.msra.mxu0 %v1214
        %1268 = vmatprep.subr.mxu0 %v1218
        %1269 = vmatpush1.msra.mxu0 %v1217
        %1270 = vmatprep.subr.mxu0 %v1221
        %1271 = vmatpush1.msra.mxu0 %v1220
        %1272 = vmatprep.subr.mxu0 0.0
        %1273 = vmatpush1.msra.mxu0 0.0
        %1274 = vmatprep.subr.mxu0 0.0
        %1275 = vmatpush1.msra.mxu0 0.0
        %1276 = vmatprep.subr.mxu0 0.0
        %1277 = vmatpush1.msra.mxu0 0.0
        %1278 = vmatprep.subr.mxu0 0.0
        %1279 = vmatpush1.msra.mxu0 0.0
        %1280 = vmatprep.subr.mxu0 0.0
        %1281 = vmatpush1.msra.mxu0 0.0
        %1282 = vmatprep.subr.mxu0 0.0
        %1283 = vmatpush1.msra.mxu0 0.0
        %1284 = vmatprep.subr.mxu0 0.0
        %1285 = vmatpush1.msra.mxu0 0.0
        %1286 = vmatprep.subr.mxu0 0.0
        %1287 = vmatpush1.msra.mxu0 0.0
        %1288 = vmatprep.subr.mxu0 0.0
        %1289 = vmatpush1.msra.mxu0 0.0
        %1290 = vmatprep.subr.mxu0 0.0
        %1291 = vmatpush1.msra.mxu0 0.0
        %1292 = vmatprep.subr.mxu0 0.0
        %1293 = vmatpush1.msra.mxu0 0.0
        %1294 = vmatprep.subr.mxu0 0.0
        %1295 = vmatpush1.msra.mxu0 0.0
        %1296 = vmatprep.subr.mxu0 0.0
        %1297 = vmatpush1.msra.mxu0 0.0
        %1298 = vmatprep.subr.mxu0 0.0
        %1299 = vmatpush1.msra.mxu0 0.0
        %1300 = vmatprep.subr.mxu0 0.0
        %1301 = vmatpush1.msra.mxu0 0.0
        %1302 = vmatprep.subr.mxu0 0.0
        %1303 = vmatpush1.msra.mxu0 0.0
        %1304 = vmatprep.mubr.f32.mxu0 0.0
        %1305 = vmatmul.mubr.f32.gmra.mrb[0].mxu0 %v1167
        %v1306 = vpop.f32.mrb[0].mxu0
        %v1307 = vadd.f32 %v1228, %v1306
        %v1308 = vpop.f32.mrb[0].mxu0
        %v1309 = vadd.f32 %v1232, %v1308
        %1310 = vmatprep.mubr.f32.mxu0 0.0
        %1311 = vmatmul.mubr.f32.gmra.mrb[0].mxu0 %v1172
        %v1312 = vpop.f32.mrb[0].mxu0
        %v1313 = vadd.f32 %v1228, %v1312
        %v1314 = vpop.f32.mrb[0].mxu0
        %v1315 = vadd.f32 %v1232, %v1314
        %1316 = vdwg.mxu0
        %1317 = vmatprep.subr.mxu0 0.0
        %1318 = vmatpush1.msra.mxu0 %v1177
        %1319 = vmatprep.subr.mxu0 0.0
        %1320 = vmatpush1.msra.mxu0 %v1180
        %1321 = vmatprep.subr.mxu0 0.0
        %1322 = vmatpush1.msra.mxu0 %v1183
        %1323 = vmatprep.subr.mxu0 0.0
        %1324 = vmatpush1.msra.mxu0 %v1186
        %1325 = vmatprep.subr.mxu0 0.0
        %1326 = vmatpush1.msra.mxu0 %v1189
        %1327 = vmatprep.subr.mxu0 0.0
        %1328 = vmatpush1.msra.mxu0 %v1192
        %1329 = vmatprep.subr.mxu0 0.0
        %1330 = vmatpush1.msra.mxu0 %v1195
        %1331 = vmatprep.subr.mxu0 0.0
        %1332 = vmatpush1.msra.mxu0 %v1198
        %1333 = vmatprep.subr.mxu0 0.0
        %1334 = vmatpush1.msra.mxu0 %v1201
        %1335 = vmatprep.subr.mxu0 0.0
        %1336 = vmatpush1.msra.mxu0 %v1204
        %1337 = vmatprep.subr.mxu0 0.0
        %1338 = vmatpush1.msra.mxu0 %v1207
        %1339 = vmatprep.subr.mxu0 0.0
        %1340 = vmatpush1.msra.mxu0 %v1210
        %1341 = vmatprep.subr.mxu0 0.0
        %1342 = vmatpush1.msra.mxu0 %v1213
        %1343 = vmatprep.subr.mxu0 0.0
        %1344 = vmatpush1.msra.mxu0 %v1216
        %1345 = vmatprep.subr.mxu0 0.0
        %1346 = vmatpush1.msra.mxu0 %v1219
        %1347 = vmatprep.subr.mxu0 0.0
        %1348 = vmatpush1.msra.mxu0 %v1222
        %1349 = vmatprep.subr.mxu0 0.0
        %1350 = vmatpush1.msra.mxu0 0.0
        %1351 = vmatprep.subr.mxu0 0.0
        %1352 = vmatpush1.msra.mxu0 0.0
        %1353 = vmatprep.subr.mxu0 0.0
        %1354 = vmatpush1.msra.mxu0 0.0
        %1355 = vmatprep.subr.mxu0 0.0
        %1356 = vmatpush1.msra.mxu0 0.0
        %1357 = vmatprep.subr.mxu0 0.0
        %1358 = vmatpush1.msra.mxu0 0.0
        %1359 = vmatprep.subr.mxu0 0.0
        %1360 = vmatpush1.msra.mxu0 0.0
        %1361 = vmatprep.subr.mxu0 0.0
        %1362 = vmatpush1.msra.mxu0 0.0
        %1363 = vmatprep.subr.mxu0 0.0
        %1364 = vmatpush1.msra.mxu0 0.0
        %1365 = vmatprep.subr.mxu0 0.0
        %1366 = vmatpush1.msra.mxu0 0.0
        %1367 = vmatprep.subr.mxu0 0.0
        %1368 = vmatpush1.msra.mxu0 0.0
        %1369 = vmatprep.subr.mxu0 0.0
        %1370 = vmatpush1.msra.mxu0 0.0
        %1371 = vmatprep.subr.mxu0 0.0
        %1372 = vmatpush1.msra.mxu0 0.0
        %1373 = vmatprep.subr.mxu0 0.0
        %1374 = vmatpush1.msra.mxu0 0.0
        %1375 = vmatprep.subr.mxu0 0.0
        %1376 = vmatpush1.msra.mxu0 0.0
        %1377 = vmatprep.subr.mxu0 0.0
        %1378 = vmatpush1.msra.mxu0 0.0
        %1379 = vmatprep.subr.mxu0 0.0
        %1380 = vmatpush1.msra.mxu0 0.0
        %1381 = vmatprep.mubr.f32.mxu0 0.0
        %1382 = vmatmul.mubr.f32.gmra.mrb[0].mxu0 %v1167
        %v1383 = vpop.f32.mrb[0].mxu0
        %v1384 = vadd.f32 %v1236, %v1383
        %v1385 = vpop.f32.mrb[0].mxu0
        %1386 = vmatprep.mubr.f32.mxu0 0.0
        %1387 = vmatmul.mubr.f32.gmra.mrb[0].mxu0 %v1172
        %v1388 = vpop.f32.mrb[0].mxu0
        %v1389 = vadd.f32 %v1236, %v1388
        %v1390 = vpop.f32.mrb[0].mxu0
        %1391 = vdwg.mxu0
        %v1392 = vsub.f32 0.0, %v1307
        %v1393 = vsub.f32 0.0, %v1309
        %v1394 = vsub.f32 0.0, %v1384
        %v1395 = vsub.f32 0.0, %v1313
        %v1396 = vsub.f32 0.0, %v1315
        %v1397 = vsub.f32 0.0, %v1389
        %v1398 = vmul.f32 %v1392, 1.442695
        %v1399 = vpow.pop %v1398
        %v1400 = vmul.f32 %v1393, 1.442695
        %v1401 = vpow.pop %v1400
        %v1402 = vmul.f32 %v1394, 1.442695
        %v1403 = vpow.pop %v1402
        %v1404 = vmul.f32 %v1395, 1.442695
        %v1405 = vpow.pop %v1404
        %v1406 = vmul.f32 %v1396, 1.442695
        %v1407 = vpow.pop %v1406
        %v1408 = vmul.f32 %v1397, 1.442695
        %v1409 = vpow.pop %v1408
        %v1410 = vadd.f32 %v1399, 1.0
        %v1411 = vadd.f32 %v1401, 1.0
        %v1412 = vadd.f32 %v1403, 1.0
        %v1413 = vadd.f32 %v1405, 1.0
        %v1414 = vadd.f32 %v1407, 1.0
        %v1415 = vadd.f32 %v1409, 1.0
        %v1416 = vrcp.pop %v1410
        %v1417 = vmul.f32 1.0, %v1416
        %v1418 = vrcp.pop %v1411
        %v1419 = vmul.f32 1.0, %v1418
        %v1420 = vrcp.pop %v1412
        %v1421 = vmul.f32 1.0, %v1420
        %v1422 = vrcp.pop %v1413
        %v1423 = vmul.f32 1.0, %v1422
        %v1424 = vrcp.pop %v1414
        %v1425 = vmul.f32 1.0, %v1424
        %v1426 = vrcp.pop %v1415
        %v1427 = vmul.f32 1.0, %v1426
        %v1428 = vadd.f32 %v1417, 1.0
        %v1429 = vadd.f32 %v1423, 1.0
        %v1430 = vadd.f32 %v1428, %v1419
        %v1431 = vadd.f32 %v1429, %v1425
        %v1432 = vmul.f32 %v1089, %v1430
        %v1433 = vmul.f32 %v1090, %v1431
        %v1434 = vadd.f32 %v1432, %v1421
        %v1435 = vadd.f32 %v1433, %v1427
        %1436 = vst [vmem:[#allocation2] sm:$0xff] %v1434
        %1437 = vst [vmem:[#allocation2 + $0x8] sm:$0xff] %v1435
        %p1438 = scmp.eq.s32.totalorder %s34, 2
        // Predicated region
        $region101: #{framework_fixed_mu_forward.1} parent=71 // pred_check
          %p1439 = pneg %p1438
        $region102: #{framework_fixed_mu_forward.1} parent=71 // pred_check_branch
          %1441 = sbr.rel (%p1439) target = $region104
        $region103: #{framework_fixed_mu_forward.1} parent=71 // pred_region
          %v1442 = vld [vmem:[#allocation2] sm:$0xff]
          %v1443 = vld [vmem:[#allocation2 + $0x8] sm:$0xff]
          %1444 = vst [vmem:[%s13] sm:$0xff] %v1442
          %1445 = vst [vmem:[%s13 + $0x8] sm:$0xff] %v1443
          %v1446 = vld [vmem:[#allocation3] sm:$0xff]
          %1447 = vst [vmem:[%s14] sm:$0xff] %v1446
        $region104: #{framework_fixed_mu_forward.1} parent=71 // pred_fallthru
          _
        // Predicated region
        $region105: #{framework_fixed_mu_forward.1} parent=71 // pred_check
          %p1448 = pneg %p345
        $region106: #{framework_fixed_mu_forward.1} parent=71 // pred_check_branch
          %1450 = sbr.rel (%p1448) target = $region108
        $region107: #{framework_fixed_mu_forward.1} parent=71 // pred_region
          _
        $region108: #{framework_fixed_mu_forward.1} parent=71 // pred_fallthru
          _
        // Predicated region
        $region109: #{framework_fixed_mu_forward.1} parent=71 // pred_check
          %p1451 = pneg %p366
        $region110: #{framework_fixed_mu_forward.1} parent=71 // pred_check_branch
          %1453 = sbr.rel (%p1451) target = $region112
        $region111: #{framework_fixed_mu_forward.1} parent=71 // pred_region
          _
        $region112: #{framework_fixed_mu_forward.1} parent=71 // pred_fallthru
          _
        // Predicated region
        $region113: #{framework_fixed_mu_forward.1} parent=71 // pred_check
          %p1454 = pneg %p345
        $region114: #{framework_fixed_mu_forward.1} parent=71 // pred_check_branch
          %1456 = sbr.rel (%p1454) target = $region116
        $region115: #{framework_fixed_mu_forward.1} parent=71 // pred_region
          _
        $region116: #{framework_fixed_mu_forward.1} parent=71 // pred_fallthru
          _
        // Predicated region
        $region117: #{framework_fixed_mu_forward.1} parent=71 // pred_check
          %p1457 = pneg %p366
        $region118: #{framework_fixed_mu_forward.1} parent=71 // pred_check_branch
          %1459 = sbr.rel (%p1457) target = $region120
        $region119: #{framework_fixed_mu_forward.1} parent=71 // pred_region
          _
        $region120: #{framework_fixed_mu_forward.1} parent=71 // pred_fallthru
          _
      $region72: #{framework_fixed_mu_forward.1} parent=5 // pred_fallthru
        _
      %p1460 = scmp.le.s32.totalorder 2, %s29
      // Predicated region
      $region121: #{framework_fixed_mu_forward.1} parent=5 // pred_check
        %p1461 = pneg %p1460
      $region122: #{framework_fixed_mu_forward.1} parent=5 // pred_check_branch
        %1463 = sbr.rel (%p1461) target = $region124
      $region123: #{framework_fixed_mu_forward.1} parent=5 // pred_region
        %s1464 = ssub.s32 %s29, 2
      $region124: #{framework_fixed_mu_forward.1} parent=5 // pred_fallthru
        _
    $region6: #{framework_fixed_mu_forward.1} parent=1 // loop_footer
      %s33 = sadd.s32 1, %s29
    $region7: #{framework_fixed_mu_forward.1} parent=1 // loop_footer_branch
      %28 = sbr.rel target = $region3
    $region8: #{framework_fixed_mu_forward.1} parent=1 // loop_exit
      _
    %1465 = vsyncpa [#allocation5], 1
    %s1466 = scalar_lea.sflag [#allocation5], 1
    %1467 = vsyncpa %s1466, 1
    %1468 = vsyncpa [#allocation7], 1
    %1469 = vsyncpa [#allocation10], 1
    %s1470 = scalar_lea.sflag [#allocation10], 1
    %1471 = vsyncpa %s1470, 1
    %1472 = vsyncpa [#allocation13], 1
    %s1473 = scalar_lea.sflag [#allocation13], 1
    %1474 = vsyncpa %s1473, 1

</llo_original>
